<compile_context>
chip_gen: v5e
topology: v5e:2x2
jax: 0.10.0
libtpu: 0.0.40
codegen_flags: <defaults>
</compile_context>

<pallas_src>
import jax
import jax.numpy as jnp
from jax.experimental import pallas as pl
from jax.experimental.pallas import tpu as pltpu

INPUT_SIZE = 420
H1, H2, H3, OUT = 512, 256, 128, 1
BN_EPS = 1e-5


def _round_up(n, m):
    return ((n + m - 1) // m) * m


def ffn_kernel(x_ref,
               w1_ref, t1_ref,
               w2_ref, t2_ref,
               w3_ref, t3_ref,
               w4_ref, b4_ref,
               o_ref):
    # Layer 1: Linear(420->512), BN scale folded into W; epilogue: bf16 shift-add + ReLU.
    # (Dropout = identity in eval mode.)
    h = jnp.dot(x_ref[...].astype(jnp.bfloat16), w1_ref[...],
                preferred_element_type=jnp.float32)
    h = jnp.maximum(h.astype(jnp.bfloat16) + t1_ref[...], 0)
    # Layer 2: Linear(512->256) + folded BN + ReLU.
    h = jnp.dot(h, w2_ref[...], preferred_element_type=jnp.float32)
    h = jnp.maximum(h.astype(jnp.bfloat16) + t2_ref[...], 0)
    # Layer 3: Linear(256->128) + folded BN + ReLU.
    h = jnp.dot(h, w3_ref[...], preferred_element_type=jnp.float32)
    h = jnp.maximum(h.astype(jnp.bfloat16) + t3_ref[...], 0)
    # Layer 4: Linear(128->1) as VPU multiply + lane reduce (avoids an N=1 MXU pass).
    out = jnp.sum(h.astype(jnp.float32) * w4_ref[...], axis=-1, keepdims=True) + b4_ref[0]
    o_ref[...] = out.astype(o_ref.dtype)


def make_params(key):
    """Deterministic parameter init matching the module's shapes."""
    params = {}
    dims = [(INPUT_SIZE, H1), (H1, H2), (H2, H3), (H3, OUT)]
    keys = jax.random.split(key, 2 * len(dims))
    for i, (fan_in, fan_out) in enumerate(dims):
        bound = 1.0 / jnp.sqrt(jnp.float32(fan_in))
        w = jax.random.uniform(keys[2 * i], (fan_in, fan_out),
                               minval=-bound, maxval=bound, dtype=jnp.float32)
        b = jax.random.uniform(keys[2 * i + 1], (fan_out,),
                               minval=-bound, maxval=bound, dtype=jnp.float32)
        params[f"w{i + 1}"] = w
        params[f"b{i + 1}"] = b
    # BatchNorm1d params at init: gamma=1, beta=0, running_mean=0, running_var=1.
    for name, n in (("bn1", H1), ("bn2", H2), ("bn3", H3)):
        params[f"{name}_gamma"] = jnp.ones((n,), jnp.float32)
        params[f"{name}_beta"] = jnp.zeros((n,), jnp.float32)
        params[f"{name}_mean"] = jnp.zeros((n,), jnp.float32)
        params[f"{name}_var"] = jnp.ones((n,), jnp.float32)
    return params


def _fold_bn(w, b, gamma, beta, mean, var):
    """Fold BatchNorm1d(eval) into the preceding Linear.

    ReLU(((x @ W + b) - mean) * s + beta) == ReLU(x @ (W * s) + ((b - mean) * s + beta)),
    with s = gamma / sqrt(var + eps). The fold is exact and done in f32, then cast bf16.
    """
    s = gamma / jnp.sqrt(var + BN_EPS)
    w_folded = (w * s[None, :]).astype(jnp.bfloat16)
    shift = ((b - mean) * s + beta).astype(jnp.bfloat16).reshape(1, -1)
    return w_folded, shift


def ffn_forward(x, params, block_batch=1024):
    B = x.shape[0]
    x_run = x
    if B < 8:
        # Tiny batches: pad to one (8, .) sublane tile.
        x_run = jnp.pad(x, ((0, 8 - B), (0, 0)))
    B_eff = x_run.shape[0]

    # Batch tiling: minimise padded rows, keep TB a multiple of 8, and use an even
    # grid of >= 2 steps (when there is enough work) so both v7x TensorCores run.
    nblk = pl.cdiv(B_eff, block_batch)
    if B_eff >= 16:
        nblk = max(nblk, 2)
    if nblk > 1 and nblk % 2:
        nblk += 1
    TB = _round_up(pl.cdiv(B_eff, nblk), 8)
    grid = (pl.cdiv(B_eff, TB),)   # ragged last block handled by Pallas (OOB rows discarded)

    w1, t1 = _fold_bn(params["w1"], params["b1"], params["bn1_gamma"],
                      params["bn1_beta"], params["bn1_mean"], params["bn1_var"])
    w2, t2 = _fold_bn(params["w2"], params["b2"], params["bn2_gamma"],
                      params["bn2_beta"], params["bn2_mean"], params["bn2_var"])
    w3, t3 = _fold_bn(params["w3"], params["b3"], params["bn3_gamma"],
                      params["bn3_beta"], params["bn3_mean"], params["bn3_var"])
    w4_row = params["w4"].reshape(1, H3).astype(jnp.float32)   # (1, 128) for VPU reduce
    b4 = params["b4"].reshape(1).astype(jnp.float32)           # SMEM scalar

    const = lambda i: (0, 0)   # resident across grid steps (DMA'd once)
    in_specs = [
        pl.BlockSpec((TB, INPUT_SIZE), lambda i: (i, 0)),    # x block (pipelined, f32)
        pl.BlockSpec((INPUT_SIZE, H1), const),               # w1 (BN scale folded, bf16)
        pl.BlockSpec((1, H1), const),                        # shift1 (bf16)
        pl.BlockSpec((H1, H2), const),                       # w2
        pl.BlockSpec((1, H2), const),                        # shift2
        pl.BlockSpec((H2, H3), const),                       # w3
        pl.BlockSpec((1, H3), const),                        # shift3
        pl.BlockSpec((1, H3), const),                        # w4 row (f32)
        pl.BlockSpec(memory_space=pltpu.MemorySpace.SMEM),   # b4 scalar
    ]
    out_specs = pl.BlockSpec((TB, OUT), lambda i: (i, 0))

    flops = 2 * B_eff * (INPUT_SIZE * H1 + H1 * H2 + H2 * H3 + H3 * OUT)
    bytes_accessed = (B_eff * INPUT_SIZE * 4 + B_eff * OUT * 4
                      + 2 * (INPUT_SIZE * H1 + H1 * H2 + H2 * H3)
                      + 2 * (H1 + H2 + H3) + 4 * (H3 + 1))

    out = pl.pallas_call(
        ffn_kernel,
        out_shape=jax.ShapeDtypeStruct((B_eff, OUT), jnp.float32),
        grid=grid,
        in_specs=in_specs,
        out_specs=out_specs,
        compiler_params=pltpu.CompilerParams(
            dimension_semantics=("parallel",),
            vmem_limit_bytes=48 * 1024 * 1024),
        cost_estimate=pl.CostEstimate(flops=flops, transcendentals=0,
                                      bytes_accessed=bytes_accessed),
    )(x_run, w1, t1, w2, t2, w3, t3, w4_row, b4)

    return out[:B]


def ffn_reference(x, params):
    """Pure-JAX f32 reference of the eval-mode forward."""
    h = x
    for i, (bn, act) in enumerate((("bn1", True), ("bn2", True),
                                   ("bn3", True), (None, False)), start=1):
        h = h @ params[f"w{i}"] + params[f"b{i}"]
        if bn is not None:
            scale = params[f"{bn}_gamma"] / jnp.sqrt(params[f"{bn}_var"] + BN_EPS)
            h = (h - params[f"{bn}_mean"]) * scale + params[f"{bn}_beta"]
        if act:
            h = jnp.maximum(h, 0.0)
    return h


if __name__ == "__main__":
    key = jax.random.PRNGKey(0)
    pkey, xkey1, xkey2 = jax.random.split(key, 3)
    params = make_params(pkey)

    # Small batch (single grid block).
    x_small = jax.random.normal(xkey1, (8, INPUT_SIZE), dtype=jnp.float32)
    out_small = jax.block_until_ready(ffn_forward(x_small, params))
    ref_small = ffn_reference(x_small, params)
    assert out_small.shape == (8, OUT), out_small.shape
    # bf16 matmul operands / bf16 epilogue with f32 accumulation -> relaxed tolerance.
    assert jnp.allclose(out_small, ref_small, atol=5e-2, rtol=5e-2), \
        float(jnp.max(jnp.abs(out_small - ref_small)))

    # Multi-block grid with ragged tail (exercises minimal-pad tiling + 2-step grid).
    x_big = jax.random.normal(xkey2, (600, INPUT_SIZE), dtype=jnp.float32)
    out_big = jax.block_until_ready(ffn_forward(x_big, params))
    ref_big = ffn_reference(x_big, params)
    assert out_big.shape == (600, OUT), out_big.shape
    assert jnp.allclose(out_big, ref_big, atol=5e-2, rtol=5e-2), \
        float(jnp.max(jnp.abs(out_big - ref_big)))

    print("KERNEL_OK")
</pallas_src>

<mosaic_0001>
module attributes {stable_mosaic.version = 11 : i64} {
  func.func @ffn_kernel(%arg0: i32, %arg1: memref<8x420xf32, #tpu.memory_space<vmem>>, %arg2: memref<420x512xbf16, #tpu.memory_space<vmem>>, %arg3: memref<1x512xbf16, #tpu.memory_space<vmem>>, %arg4: memref<512x256xbf16, #tpu.memory_space<vmem>>, %arg5: memref<1x256xbf16, #tpu.memory_space<vmem>>, %arg6: memref<256x128xbf16, #tpu.memory_space<vmem>>, %arg7: memref<1x128xbf16, #tpu.memory_space<vmem>>, %arg8: memref<1x128xf32, #tpu.memory_space<vmem>>, %arg9: memref<1xf32, #tpu.memory_space<smem>>, %arg10: memref<8x1xf32, #tpu.memory_space<vmem>>) attributes {dimension_semantics = [#tpu.dimension_semantics<parallel>], iteration_bounds = array<i64: 1>, scalar_prefetch = 0 : i64, scratch_operands = 0 : i64, tpu.core_type = #tpu.core_type<tc>, window_params = [{transform_indices = @transform_0, window_bounds = array<i64: 8, 420>}, {pipeline_mode = #tpu.pipeline_mode<synchronous>, transform_indices = @transform_1, window_bounds = array<i64: 420, 512>}, {pipeline_mode = #tpu.pipeline_mode<synchronous>, transform_indices = @transform_2, window_bounds = array<i64: 1, 512>}, {pipeline_mode = #tpu.pipeline_mode<synchronous>, transform_indices = @transform_3, window_bounds = array<i64: 512, 256>}, {pipeline_mode = #tpu.pipeline_mode<synchronous>, transform_indices = @transform_4, window_bounds = array<i64: 1, 256>}, {pipeline_mode = #tpu.pipeline_mode<synchronous>, transform_indices = @transform_5, window_bounds = array<i64: 256, 128>}, {pipeline_mode = #tpu.pipeline_mode<synchronous>, transform_indices = @transform_6, window_bounds = array<i64: 1, 128>}, {pipeline_mode = #tpu.pipeline_mode<synchronous>, transform_indices = @transform_7, window_bounds = array<i64: 1, 128>}, {transform_indices = @transform_8, window_bounds = array<i64: 1>}, {transform_indices = @transform_9, window_bounds = array<i64: 8, 1>}]} {
    %c0 = arith.constant 0 : index
    %c0_0 = arith.constant 0 : index
    %0 = vector.load %arg1[%c0, %c0_0] : memref<8x420xf32, #tpu.memory_space<vmem>>, vector<8x420xf32>
    %1 = arith.truncf %0 : vector<8x420xf32> to vector<8x420xbf16>
    %c0_1 = arith.constant 0 : index
    %c0_2 = arith.constant 0 : index
    %2 = vector.load %arg2[%c0_1, %c0_2] : memref<420x512xbf16, #tpu.memory_space<vmem>>, vector<420x512xbf16>
    %cst = arith.constant dense<0.000000e+00> : vector<8x512xf32>
    %3 = tpu.matmul %1, %2, %cst {dimension_numbers = #tpu.dot_dimension_numbers<[1], [0], [0], [1], [0, 0, 1, 1], [], []>} : vector<8x420xbf16>, vector<420x512xbf16>, vector<8x512xf32> -> vector<8x512xf32>
    %4 = arith.truncf %3 : vector<8x512xf32> to vector<8x512xbf16>
    %c0_3 = arith.constant 0 : index
    %c0_4 = arith.constant 0 : index
    %5 = vector.load %arg3[%c0_3, %c0_4] : memref<1x512xbf16, #tpu.memory_space<vmem>>, vector<1x512xbf16>
    %6 = vector.broadcast %5 : vector<1x512xbf16> to vector<8x512xbf16>
    %7 = arith.addf %4, %6 : vector<8x512xbf16>
    %cst_5 = arith.constant 0.000000e+00 : bf16
    %8 = vector.broadcast %cst_5 : bf16 to vector<8x512xbf16>
    %9 = arith.maximumf %7, %8 : vector<8x512xbf16>
    %c0_6 = arith.constant 0 : index
    %c0_7 = arith.constant 0 : index
    %10 = vector.load %arg4[%c0_6, %c0_7] : memref<512x256xbf16, #tpu.memory_space<vmem>>, vector<512x256xbf16>
    %cst_8 = arith.constant dense<0.000000e+00> : vector<8x256xf32>
    %11 = tpu.matmul %9, %10, %cst_8 {dimension_numbers = #tpu.dot_dimension_numbers<[1], [0], [0], [1], [0, 0, 1, 1], [], []>} : vector<8x512xbf16>, vector<512x256xbf16>, vector<8x256xf32> -> vector<8x256xf32>
    %12 = arith.truncf %11 : vector<8x256xf32> to vector<8x256xbf16>
    %c0_9 = arith.constant 0 : index
    %c0_10 = arith.constant 0 : index
    %13 = vector.load %arg5[%c0_9, %c0_10] : memref<1x256xbf16, #tpu.memory_space<vmem>>, vector<1x256xbf16>
    %14 = vector.broadcast %13 : vector<1x256xbf16> to vector<8x256xbf16>
    %15 = arith.addf %12, %14 : vector<8x256xbf16>
    %cst_11 = arith.constant 0.000000e+00 : bf16
    %16 = vector.broadcast %cst_11 : bf16 to vector<8x256xbf16>
    %17 = arith.maximumf %15, %16 : vector<8x256xbf16>
    %c0_12 = arith.constant 0 : index
    %c0_13 = arith.constant 0 : index
    %18 = vector.load %arg6[%c0_12, %c0_13] : memref<256x128xbf16, #tpu.memory_space<vmem>>, vector<256x128xbf16>
    %cst_14 = arith.constant dense<0.000000e+00> : vector<8x128xf32>
    %19 = tpu.matmul %17, %18, %cst_14 {dimension_numbers = #tpu.dot_dimension_numbers<[1], [0], [0], [1], [0, 0, 1, 1], [], []>} : vector<8x256xbf16>, vector<256x128xbf16>, vector<8x128xf32> -> vector<8x128xf32>
    %20 = arith.truncf %19 : vector<8x128xf32> to vector<8x128xbf16>
    %c0_15 = arith.constant 0 : index
    %c0_16 = arith.constant 0 : index
    %21 = vector.load %arg7[%c0_15, %c0_16] : memref<1x128xbf16, #tpu.memory_space<vmem>>, vector<1x128xbf16>
    %22 = vector.broadcast %21 : vector<1x128xbf16> to vector<8x128xbf16>
    %23 = arith.addf %20, %22 : vector<8x128xbf16>
    %cst_17 = arith.constant 0.000000e+00 : bf16
    %24 = vector.broadcast %cst_17 : bf16 to vector<8x128xbf16>
    %25 = arith.maximumf %23, %24 : vector<8x128xbf16>
    %26 = arith.extf %25 : vector<8x128xbf16> to vector<8x128xf32>
    %c0_18 = arith.constant 0 : index
    %c0_19 = arith.constant 0 : index
    %27 = vector.load %arg8[%c0_18, %c0_19] : memref<1x128xf32, #tpu.memory_space<vmem>>, vector<1x128xf32>
    %28 = vector.broadcast %27 : vector<1x128xf32> to vector<8x128xf32>
    %29 = arith.mulf %26, %28 : vector<8x128xf32>
    %cst_20 = arith.constant dense<0.000000e+00> : vector<8xf32>
    %30 = vector.multi_reduction <add>, %29, %cst_20 [1] : vector<8x128xf32> to vector<8xf32>
    %31 = vector.shape_cast %30 : vector<8xf32> to vector<8x1xf32>
    %c0_21 = arith.constant 0 : index
    %32 = memref.load %arg9[%c0_21] : memref<1xf32, #tpu.memory_space<smem>>
    %33 = vector.broadcast %32 : f32 to vector<8x1xf32>
    %34 = arith.addf %31, %33 : vector<8x1xf32>
    %c0_22 = arith.constant 0 : index
    %c0_23 = arith.constant 0 : index
    %35 = vector.load %arg10[%c0_22, %c0_23] : memref<8x1xf32, #tpu.memory_space<vmem>>, vector<8x1xf32>
    tpu.vector_store %arg10[%c0_22, %c0_23], %34 {strides = array<i32>} : memref<8x1xf32, #tpu.memory_space<vmem>>, vector<8x1xf32>,
    return
  }
  func.func @transform_0(%arg0: i32) -> (i32, i32) {
    %c0_i32 = arith.constant 0 : i32
    %c0_i32_0 = arith.constant 0 : i32
    return %arg0, %c0_i32 : i32, i32
  }
  func.func @transform_1(%arg0: i32) -> (i32, i32) {
    %c0_i32 = arith.constant 0 : i32
    %c0_i32_0 = arith.constant 0 : i32
    %c0_i32_1 = arith.constant 0 : i32
    return %c0_i32, %c0_i32_0 : i32, i32
  }
  func.func @transform_2(%arg0: i32) -> (i32, i32) {
    %c0_i32 = arith.constant 0 : i32
    %c0_i32_0 = arith.constant 0 : i32
    %c0_i32_1 = arith.constant 0 : i32
    return %c0_i32, %c0_i32_0 : i32, i32
  }
  func.func @transform_3(%arg0: i32) -> (i32, i32) {
    %c0_i32 = arith.constant 0 : i32
    %c0_i32_0 = arith.constant 0 : i32
    %c0_i32_1 = arith.constant 0 : i32
    return %c0_i32, %c0_i32_0 : i32, i32
  }
  func.func @transform_4(%arg0: i32) -> (i32, i32) {
    %c0_i32 = arith.constant 0 : i32
    %c0_i32_0 = arith.constant 0 : i32
    %c0_i32_1 = arith.constant 0 : i32
    return %c0_i32, %c0_i32_0 : i32, i32
  }
  func.func @transform_5(%arg0: i32) -> (i32, i32) {
    %c0_i32 = arith.constant 0 : i32
    %c0_i32_0 = arith.constant 0 : i32
    %c0_i32_1 = arith.constant 0 : i32
    return %c0_i32, %c0_i32_0 : i32, i32
  }
  func.func @transform_6(%arg0: i32) -> (i32, i32) {
    %c0_i32 = arith.constant 0 : i32
    %c0_i32_0 = arith.constant 0 : i32
    %c0_i32_1 = arith.constant 0 : i32
    return %c0_i32, %c0_i32_0 : i32, i32
  }
  func.func @transform_7(%arg0: i32) -> (i32, i32) {
    %c0_i32 = arith.constant 0 : i32
    %c0_i32_0 = arith.constant 0 : i32
    %c0_i32_1 = arith.constant 0 : i32
    return %c0_i32, %c0_i32_0 : i32, i32
  }
  func.func @transform_8(%arg0: i32) -> i32 {
    %c0_i32 = arith.constant 0 : i32
    %c0_i32_0 = arith.constant 0 : i32
    return %c0_i32 : i32
  }
  func.func @transform_9(%arg0: i32) -> (i32, i32) {
    %c0_i32 = arith.constant 0 : i32
    %c0_i32_0 = arith.constant 0 : i32
    return %arg0, %c0_i32 : i32, i32
  }
}

</mosaic_0001>

<llo_original>
// kernel: tpu_custom_call.1
$region0: #{tpu_custom_call.1}
  #allocation0 [shape = 'u32[]', space=smem, size = 0x4, offset = 0x4, fixed_abs, tag = 'smem constant byte address 0x4 - core index']
  #allocation1 [shape = 'u32[72,128]{1,0:T(1,128)}', space=vmem, size = 0x9000, scoped, tag = 'internal scratch']
  #allocation2 [shape = 'f32[1]{0:T(128)S(6)}', space=smem, size = 0x200, scoped, tag = 'scoped memory for tpu_custom_call.1']
  %s0 = inlined_call_operand.hbm [shape: f32[8,420], index: 0, kind: input, shape index: {}]
  %s1 = inlined_call_operand.hbm [shape: bf16[420,512], index: 1, kind: input, shape index: {}]
  %s2 = inlined_call_operand.hbm [shape: bf16[1,512], index: 2, kind: input, shape index: {}]
  %s3 = inlined_call_operand.hbm [shape: bf16[512,256], index: 3, kind: input, shape index: {}]
  %s4 = inlined_call_operand.vmem [shape: bf16[1,256], index: 4, kind: input, shape index: {}]
  %s5 = inlined_call_operand.hbm [shape: bf16[256,128], index: 5, kind: input, shape index: {}]
  %s6 = inlined_call_operand.vmem [shape: bf16[1,128], index: 6, kind: input, shape index: {}]
  %s7 = inlined_call_operand.vmem [shape: f32[1,128], index: 7, kind: input, shape index: {}]
  %s8 = inlined_call_operand.<no memory space> [shape: f32[1], index: 8, kind: input, shape index: {}]
  %s9 = inlined_call_operand.vmem [shape: f32[8,1], index: 9, kind: output, shape index: {}]
  %s10 = sld [smem:[#allocation0]]
  $region66: #{tpu_custom_call.1} parent=0
    _
  %s12 = ssub.s32 1, %s10
  %s13 = scalar_select 0, %s12, %s10
  %14 = sst [smem:[#allocation2]] %s8
  $region1: #{tpu_custom_call.1} parent=0
    #allocation3 [shape = 'u8[16384]{0}', space=vmem, size = 0x4000, scoped, tag = 'input window, operand 0, single buffered']
    #allocation4 [shape = 's32[1]{0}', space=sflag, size = 0x4, scoped, tag = 'scoped memory for tpu_custom_call.1']
    #allocation5 [shape = 'u8[434176]{0}', space=vmem, size = 0x6a000, scoped, tag = 'input window, operand 1, single buffered']
    #allocation6 [shape = 's32[1]{0}', space=sflag, size = 0x4, scoped, tag = 'scoped memory for tpu_custom_call.1']
    #allocation7 [shape = 'u8[2048]{0}', space=vmem, size = 0x800, scoped, tag = 'input window, operand 2, single buffered']
    #allocation8 [shape = 'u8[262144]{0}', space=vmem, size = 0x40000, scoped, tag = 'input window, operand 3, single buffered']
    #allocation9 [shape = 's32[1]{0}', space=sflag, size = 0x4, scoped, tag = 'scoped memory for tpu_custom_call.1']
    #allocation10 [shape = 'u8[65536]{0}', space=vmem, size = 0x10000, scoped, tag = 'input window, operand 5, single buffered']
    %15 = vsyncpa [#allocation4], 0
    %16 = vsyncpa [#allocation6], 0
    %17 = vsyncpa [#allocation9], 0
    // Predicated region
    $region2: #{tpu_custom_call.1} parent=1 // pred_check
      _
    $region3: #{tpu_custom_call.1} parent=1 // pred_check_branch
      %19 = sbr.rel (0) target = $region5
    $region4: #{tpu_custom_call.1} parent=1 // pred_region
      %21 = vsyncadd [#allocation4], 0
      %s23 = sshll.u32 %s0, 4
      %s24 = int_to_ptr.hbm [resolvable:$true] %s23
      %s25 = sshll.u32 [#allocation3], 4
      %s26 = int_to_ptr.vmem [resolvable:$true] %s25
      %28 = dma.hbm_to_vmem [thread:$0]  %s24, 512, %s26, [#allocation4]
    $region5: #{tpu_custom_call.1} parent=1 // pred_fallthru
      _
    // Predicated region
    $region6: #{tpu_custom_call.1} parent=1 // pred_check
      _
    $region7: #{tpu_custom_call.1} parent=1 // pred_check_branch
      %30 = sbr.rel (0) target = $region9
    $region8: #{tpu_custom_call.1} parent=1 // pred_region
      %32 = vsyncadd [#allocation6], 0
      %s33 = sshll.u32 %s1, 4
      %s34 = int_to_ptr.hbm [resolvable:$true] %s33
      %s35 = sshll.u32 [#allocation5], 4
      %s36 = int_to_ptr.vmem [resolvable:$true] %s35
      %41 = dma.hbm_to_vmem [thread:$0]  %s34, 13568, %s36, [#allocation6], 256, 256, 16
    $region9: #{tpu_custom_call.1} parent=1 // pred_fallthru
      _
    // Predicated region
    $region10: #{tpu_custom_call.1} parent=1 // pred_check
      _
    $region11: #{tpu_custom_call.1} parent=1 // pred_check_branch
      %43 = sbr.rel (0) target = $region13
    $region12: #{tpu_custom_call.1} parent=1 // pred_region
      %45 = vsyncadd [#allocation6], 0
      %s47 = sshll.u32 %s2, 4
      %s48 = int_to_ptr.hbm [resolvable:$true] %s47
      %s49 = sshll.u32 [#allocation7], 4
      %s50 = int_to_ptr.vmem [resolvable:$true] %s49
      %52 = dma.hbm_to_vmem [thread:$0]  %s48, 64, %s50, [#allocation6]
    $region13: #{tpu_custom_call.1} parent=1 // pred_fallthru
      _
    // Predicated region
    $region14: #{tpu_custom_call.1} parent=1 // pred_check
      _
    $region15: #{tpu_custom_call.1} parent=1 // pred_check_branch
      %54 = sbr.rel (0) target = $region17
    $region16: #{tpu_custom_call.1} parent=1 // pred_region
      %56 = vsyncadd [#allocation9], 0
      %s57 = sshll.u32 %s3, 4
      %s58 = int_to_ptr.hbm [resolvable:$true] %s57
      %s59 = sshll.u32 [#allocation8], 4
      %s60 = int_to_ptr.vmem [resolvable:$true] %s59
      %65 = dma.hbm_to_vmem [thread:$0]  %s58, 8192, %s60, [#allocation9], 128, 128, 8
    $region17: #{tpu_custom_call.1} parent=1 // pred_fallthru
      _
    // Predicated region
    $region18: #{tpu_custom_call.1} parent=1 // pred_check
      _
    $region19: #{tpu_custom_call.1} parent=1 // pred_check_branch
      %67 = sbr.rel (0) target = $region21
    $region20: #{tpu_custom_call.1} parent=1 // pred_region
      _
    $region21: #{tpu_custom_call.1} parent=1 // pred_fallthru
      _
    // Predicated region
    $region22: #{tpu_custom_call.1} parent=1 // pred_check
      _
    $region23: #{tpu_custom_call.1} parent=1 // pred_check_branch
      %69 = sbr.rel (0) target = $region25
    $region24: #{tpu_custom_call.1} parent=1 // pred_region
      %71 = vsyncadd [#allocation9], 0
      %s72 = sshll.u32 %s5, 4
      %s73 = int_to_ptr.hbm [resolvable:$true] %s72
      %s74 = sshll.u32 [#allocation10], 4
      %s75 = int_to_ptr.vmem [resolvable:$true] %s74
      %80 = dma.hbm_to_vmem [thread:$0]  %s73, 2048, %s75, [#allocation9], 64, 64, 4
    $region25: #{tpu_custom_call.1} parent=1 // pred_fallthru
      _
    // Predicated region
    $region26: #{tpu_custom_call.1} parent=1 // pred_check
      _
    $region27: #{tpu_custom_call.1} parent=1 // pred_check_branch
      %82 = sbr.rel (0) target = $region29
    $region28: #{tpu_custom_call.1} parent=1 // pred_region
      _
    $region29: #{tpu_custom_call.1} parent=1 // pred_fallthru
      _
    // Predicated region
    $region30: #{tpu_custom_call.1} parent=1 // pred_check
      _
    $region31: #{tpu_custom_call.1} parent=1 // pred_check_branch
      %84 = sbr.rel (0) target = $region33
    $region32: #{tpu_custom_call.1} parent=1 // pred_region
      _
    $region33: #{tpu_custom_call.1} parent=1 // pred_fallthru
      _
    // Predicated region
    $region34: #{tpu_custom_call.1} parent=1 // pred_check
      _
    $region35: #{tpu_custom_call.1} parent=1 // pred_check_branch
      %86 = sbr.rel (0) target = $region37
    $region36: #{tpu_custom_call.1} parent=1 // pred_region
      _
    $region37: #{tpu_custom_call.1} parent=1 // pred_fallthru
      _
    // Predicated region
    $region38: #{tpu_custom_call.1} parent=1 // pred_check
      _
    $region39: #{tpu_custom_call.1} parent=1 // pred_check_branch
      %88 = sbr.rel (0) target = $region41
    $region40: #{tpu_custom_call.1} parent=1 // pred_region
      %90 = dma.done [#allocation4], 512
    $region41: #{tpu_custom_call.1} parent=1 // pred_fallthru
      _
    // Predicated region
    $region42: #{tpu_custom_call.1} parent=1 // pred_check
      _
    $region43: #{tpu_custom_call.1} parent=1 // pred_check_branch
      %92 = sbr.rel (0) target = $region45
    $region44: #{tpu_custom_call.1} parent=1 // pred_region
      %94 = dma.done [#allocation6], 13568
    $region45: #{tpu_custom_call.1} parent=1 // pred_fallthru
      _
    // Predicated region
    $region46: #{tpu_custom_call.1} parent=1 // pred_check
      _
    $region47: #{tpu_custom_call.1} parent=1 // pred_check_branch
      %96 = sbr.rel (0) target = $region49
    $region48: #{tpu_custom_call.1} parent=1 // pred_region
      %98 = dma.done [#allocation6], 64
    $region49: #{tpu_custom_call.1} parent=1 // pred_fallthru
      _
    // Predicated region
    $region50: #{tpu_custom_call.1} parent=1 // pred_check
      _
    $region51: #{tpu_custom_call.1} parent=1 // pred_check_branch
      %100 = sbr.rel (0) target = $region53
    $region52: #{tpu_custom_call.1} parent=1 // pred_region
      %102 = dma.done [#allocation9], 8192
    $region53: #{tpu_custom_call.1} parent=1 // pred_fallthru
      _
    // Predicated region
    $region54: #{tpu_custom_call.1} parent=1 // pred_check
      _
    $region55: #{tpu_custom_call.1} parent=1 // pred_check_branch
      %104 = sbr.rel (0) target = $region57
    $region56: #{tpu_custom_call.1} parent=1 // pred_region
      %106 = dma.done [#allocation9], 2048
    $region57: #{tpu_custom_call.1} parent=1 // pred_fallthru
      _
    %v108 = vld [vmem:[#allocation3] sm:$0xff]
    %v109 = vld [vmem:[#allocation3 + $0x8] sm:$0xff]
    %v110 = vld [vmem:[#allocation3 + $0x10] sm:$0xff]
    %v111 = vld [vmem:[#allocation3 + $0x18] sm:$0xff]
    %v112 = vpack.c.bf16 %v108, %v108
    %v113 = vpack.c.bf16 %v109, %v109
    %v114 = vpack.c.bf16 %v110, %v110
    %v115 = vpack.c.bf16 %v111, %v111
    %v116 = vld [vmem:[#allocation5] sm:$0xff]
    %v117 = vld [vmem:[#allocation5 + $0x8] sm:$0xff]
    %v118 = vld [vmem:[#allocation5 + $0x10] sm:$0xff]
    %v119 = vld [vmem:[#allocation5 + $0x18] sm:$0xff]
    %v120 = vld [vmem:[#allocation5 + $0x20] sm:$0xff]
    %v121 = vld [vmem:[#allocation5 + $0x28] sm:$0xff]
    %v122 = vld [vmem:[#allocation5 + $0x30] sm:$0xff]
    %v123 = vld [vmem:[#allocation5 + $0x38] sm:$0xff]
    %v124 = vld [vmem:[#allocation5 + $0x40] sm:$0xff]
    %v125 = vld [vmem:[#allocation5 + $0x48] sm:$0xff]
    %v126 = vld [vmem:[#allocation5 + $0x50] sm:$0xff]
    %v127 = vld [vmem:[#allocation5 + $0x58] sm:$0xff]
    %v128 = vld [vmem:[#allocation5 + $0x60] sm:$0xff]
    %v129 = vld [vmem:[#allocation5 + $0x68] sm:$0xff]
    %v130 = vld [vmem:[#allocation5 + $0x70] sm:$0xff]
    %v131 = vld [vmem:[#allocation5 + $0x78] sm:$0xff]
    %v132 = vld [vmem:[#allocation5 + $0x80] sm:$0xff]
    %v133 = vld [vmem:[#allocation5 + $0x88] sm:$0xff]
    %v134 = vld [vmem:[#allocation5 + $0x90] sm:$0xff]
    %v135 = vld [vmem:[#allocation5 + $0x98] sm:$0xff]
    %v136 = vld [vmem:[#allocation5 + $0xa0] sm:$0xff]
    %v137 = vld [vmem:[#allocation5 + $0xa8] sm:$0xff]
    %v138 = vld [vmem:[#allocation5 + $0xb0] sm:$0xff]
    %v139 = vld [vmem:[#allocation5 + $0xb8] sm:$0xff]
    %v140 = vld [vmem:[#allocation5 + $0xc0] sm:$0xff]
    %v141 = vld [vmem:[#allocation5 + $0xc8] sm:$0xff]
    %v142 = vld [vmem:[#allocation5 + $0xd0] sm:$0xff]
    %v143 = vld [vmem:[#allocation5 + $0xd8] sm:$0xff]
    %v144 = vld [vmem:[#allocation5 + $0xe0] sm:$0xff]
    %v145 = vld [vmem:[#allocation5 + $0xe8] sm:$0xff]
    %v146 = vld [vmem:[#allocation5 + $0xf0] sm:$0xff]
    %v147 = vld [vmem:[#allocation5 + $0xf8] sm:$0xff]
    %v148 = vld [vmem:[#allocation5 + $0x100] sm:$0xff]
    %v149 = vld [vmem:[#allocation5 + $0x108] sm:$0xff]
    %v150 = vld [vmem:[#allocation5 + $0x110] sm:$0xff]
    %v151 = vld [vmem:[#allocation5 + $0x118] sm:$0xff]
    %v152 = vld [vmem:[#allocation5 + $0x120] sm:$0xff]
    %v153 = vld [vmem:[#allocation5 + $0x128] sm:$0xff]
    %v154 = vld [vmem:[#allocation5 + $0x130] sm:$0xff]
    %v155 = vld [vmem:[#allocation5 + $0x138] sm:$0xff]
    %v156 = vld [vmem:[#allocation5 + $0x140] sm:$0xff]
    %v157 = vld [vmem:[#allocation5 + $0x148] sm:$0xff]
    %v158 = vld [vmem:[#allocation5 + $0x150] sm:$0xff]
    %v159 = vld [vmem:[#allocation5 + $0x158] sm:$0xff]
    %v160 = vld [vmem:[#allocation5 + $0x160] sm:$0xff]
    %v161 = vld [vmem:[#allocation5 + $0x168] sm:$0xff]
    %v162 = vld [vmem:[#allocation5 + $0x170] sm:$0xff]
    %v163 = vld [vmem:[#allocation5 + $0x178] sm:$0xff]
    %v164 = vld [vmem:[#allocation5 + $0x180] sm:$0xff]
    %v165 = vld [vmem:[#allocation5 + $0x188] sm:$0xff]
    %v166 = vld [vmem:[#allocation5 + $0x190] sm:$0xff]
    %v167 = vld [vmem:[#allocation5 + $0x198] sm:$0xff]
    %v168 = vld [vmem:[#allocation5 + $0x1a0] sm:$0xff]
    %v169 = vld [vmem:[#allocation5 + $0x1a8] sm:$0xff]
    %v170 = vld [vmem:[#allocation5 + $0x1b0] sm:$0xff]
    %v171 = vld [vmem:[#allocation5 + $0x1b8] sm:$0xff]
    %v172 = vld [vmem:[#allocation5 + $0x1c0] sm:$0xff]
    %v173 = vld [vmem:[#allocation5 + $0x1c8] sm:$0xff]
    %v174 = vld [vmem:[#allocation5 + $0x1d0] sm:$0xff]
    %v175 = vld [vmem:[#allocation5 + $0x1d8] sm:$0xff]
    %v176 = vld [vmem:[#allocation5 + $0x1e0] sm:$0xff]
    %v177 = vld [vmem:[#allocation5 + $0x1e8] sm:$0xff]
    %v178 = vld [vmem:[#allocation5 + $0x1f0] sm:$0xff]
    %v179 = vld [vmem:[#allocation5 + $0x1f8] sm:$0xff]
    %v180 = vld [vmem:[#allocation5 + $0x200] sm:$0xff]
    %v181 = vld [vmem:[#allocation5 + $0x208] sm:$0xff]
    %v182 = vld [vmem:[#allocation5 + $0x210] sm:$0xff]
    %v183 = vld [vmem:[#allocation5 + $0x218] sm:$0xff]
    %v184 = vld [vmem:[#allocation5 + $0x220] sm:$0xff]
    %v185 = vld [vmem:[#allocation5 + $0x228] sm:$0xff]
    %v186 = vld [vmem:[#allocation5 + $0x230] sm:$0xff]
    %v187 = vld [vmem:[#allocation5 + $0x238] sm:$0xff]
    %v188 = vld [vmem:[#allocation5 + $0x240] sm:$0xff]
    %v189 = vld [vmem:[#allocation5 + $0x248] sm:$0xff]
    %v190 = vld [vmem:[#allocation5 + $0x250] sm:$0xff]
    %v191 = vld [vmem:[#allocation5 + $0x258] sm:$0xff]
    %v192 = vld [vmem:[#allocation5 + $0x260] sm:$0xff]
    %v193 = vld [vmem:[#allocation5 + $0x268] sm:$0xff]
    %v194 = vld [vmem:[#allocation5 + $0x270] sm:$0xff]
    %v195 = vld [vmem:[#allocation5 + $0x278] sm:$0xff]
    %v196 = vld [vmem:[#allocation5 + $0x280] sm:$0xff]
    %v197 = vld [vmem:[#allocation5 + $0x288] sm:$0xff]
    %v198 = vld [vmem:[#allocation5 + $0x290] sm:$0xff]
    %v199 = vld [vmem:[#allocation5 + $0x298] sm:$0xff]
    %v200 = vld [vmem:[#allocation5 + $0x2a0] sm:$0xff]
    %v201 = vld [vmem:[#allocation5 + $0x2a8] sm:$0xff]
    %v202 = vld [vmem:[#allocation5 + $0x2b0] sm:$0xff]
    %v203 = vld [vmem:[#allocation5 + $0x2b8] sm:$0xff]
    %v204 = vld [vmem:[#allocation5 + $0x2c0] sm:$0xff]
    %v205 = vld [vmem:[#allocation5 + $0x2c8] sm:$0xff]
    %v206 = vld [vmem:[#allocation5 + $0x2d0] sm:$0xff]
    %v207 = vld [vmem:[#allocation5 + $0x2d8] sm:$0xff]
    %v208 = vld [vmem:[#allocation5 + $0x2e0] sm:$0xff]
    %v209 = vld [vmem:[#allocation5 + $0x2e8] sm:$0xff]
    %v210 = vld [vmem:[#allocation5 + $0x2f0] sm:$0xff]
    %v211 = vld [vmem:[#allocation5 + $0x2f8] sm:$0xff]
    %v212 = vld [vmem:[#allocation5 + $0x300] sm:$0xff]
    %v213 = vld [vmem:[#allocation5 + $0x308] sm:$0xff]
    %v214 = vld [vmem:[#allocation5 + $0x310] sm:$0xff]
    %v215 = vld [vmem:[#allocation5 + $0x318] sm:$0xff]
    %v216 = vld [vmem:[#allocation5 + $0x320] sm:$0xff]
    %v217 = vld [vmem:[#allocation5 + $0x328] sm:$0xff]
    %v218 = vld [vmem:[#allocation5 + $0x330] sm:$0xff]
    %v219 = vld [vmem:[#allocation5 + $0x338] sm:$0xff]
    %v220 = vld [vmem:[#allocation5 + $0x340] sm:$0x33]
    %v221 = vld [vmem:[#allocation5 + $0x348] sm:$0x33]
    %v328 = vunpack.c.l.b16 %v116
    %v329 = vunpack.c.h.b16 %v116
    %v330 = vunpack.c.l.b16 %v117
    %v331 = vunpack.c.h.b16 %v117
    %v332 = vunpack.c.l.b16 %v118
    %v333 = vunpack.c.h.b16 %v118
    %v334 = vunpack.c.l.b16 %v119
    %v335 = vunpack.c.h.b16 %v119
    %v336 = vunpack.c.l.b16 %v120
    %v337 = vunpack.c.h.b16 %v120
    %v338 = vunpack.c.l.b16 %v121
    %v339 = vunpack.c.h.b16 %v121
    %v340 = vunpack.c.l.b16 %v122
    %v341 = vunpack.c.h.b16 %v122
    %v342 = vunpack.c.l.b16 %v123
    %v343 = vunpack.c.h.b16 %v123
    %v344 = vunpack.c.l.b16 %v124
    %v345 = vunpack.c.h.b16 %v124
    %v346 = vunpack.c.l.b16 %v125
    %v347 = vunpack.c.h.b16 %v125
    %v348 = vunpack.c.l.b16 %v126
    %v349 = vunpack.c.h.b16 %v126
    %v350 = vunpack.c.l.b16 %v127
    %v351 = vunpack.c.h.b16 %v127
    %v352 = vunpack.c.l.b16 %v128
    %v353 = vunpack.c.h.b16 %v128
    %v354 = vunpack.c.l.b16 %v129
    %v355 = vunpack.c.h.b16 %v129
    %v356 = vunpack.c.l.b16 %v130
    %v357 = vunpack.c.h.b16 %v130
    %v358 = vunpack.c.l.b16 %v131
    %v359 = vunpack.c.h.b16 %v131
    %v360 = vunpack.c.l.b16 %v132
    %v361 = vunpack.c.h.b16 %v132
    %v362 = vunpack.c.l.b16 %v133
    %v363 = vunpack.c.h.b16 %v133
    %v364 = vunpack.c.l.b16 %v134
    %v365 = vunpack.c.h.b16 %v134
    %v366 = vunpack.c.l.b16 %v135
    %v367 = vunpack.c.h.b16 %v135
    %v368 = vunpack.c.l.b16 %v136
    %v369 = vunpack.c.h.b16 %v136
    %v370 = vunpack.c.l.b16 %v137
    %v371 = vunpack.c.h.b16 %v137
    %v372 = vunpack.c.l.b16 %v138
    %v373 = vunpack.c.h.b16 %v138
    %v374 = vunpack.c.l.b16 %v139
    %v375 = vunpack.c.h.b16 %v139
    %v376 = vunpack.c.l.b16 %v140
    %v377 = vunpack.c.h.b16 %v140
    %v378 = vunpack.c.l.b16 %v141
    %v379 = vunpack.c.h.b16 %v141
    %v380 = vunpack.c.l.b16 %v142
    %v381 = vunpack.c.h.b16 %v142
    %v382 = vunpack.c.l.b16 %v143
    %v383 = vunpack.c.h.b16 %v143
    %v384 = vunpack.c.l.b16 %v144
    %v385 = vunpack.c.h.b16 %v144
    %v386 = vunpack.c.l.b16 %v145
    %v387 = vunpack.c.h.b16 %v145
    %v388 = vunpack.c.l.b16 %v146
    %v389 = vunpack.c.h.b16 %v146
    %v390 = vunpack.c.l.b16 %v147
    %v391 = vunpack.c.h.b16 %v147
    %v392 = vunpack.c.l.b16 %v148
    %v393 = vunpack.c.h.b16 %v148
    %v394 = vunpack.c.l.b16 %v149
    %v395 = vunpack.c.h.b16 %v149
    %v396 = vunpack.c.l.b16 %v150
    %v397 = vunpack.c.h.b16 %v150
    %v398 = vunpack.c.l.b16 %v151
    %v399 = vunpack.c.h.b16 %v151
    %v400 = vunpack.c.l.b16 %v152
    %v401 = vunpack.c.h.b16 %v152
    %v402 = vunpack.c.l.b16 %v153
    %v403 = vunpack.c.h.b16 %v153
    %v404 = vunpack.c.l.b16 %v154
    %v405 = vunpack.c.h.b16 %v154
    %v406 = vunpack.c.l.b16 %v155
    %v407 = vunpack.c.h.b16 %v155
    %v408 = vunpack.c.l.b16 %v156
    %v409 = vunpack.c.h.b16 %v156
    %v410 = vunpack.c.l.b16 %v157
    %v411 = vunpack.c.h.b16 %v157
    %v412 = vunpack.c.l.b16 %v158
    %v413 = vunpack.c.h.b16 %v158
    %v414 = vunpack.c.l.b16 %v159
    %v415 = vunpack.c.h.b16 %v159
    %v416 = vunpack.c.l.b16 %v160
    %v417 = vunpack.c.h.b16 %v160
    %v418 = vunpack.c.l.b16 %v161
    %v419 = vunpack.c.h.b16 %v161
    %v420 = vunpack.c.l.b16 %v162
    %v421 = vunpack.c.h.b16 %v162
    %v422 = vunpack.c.l.b16 %v163
    %v423 = vunpack.c.h.b16 %v163
    %v424 = vunpack.c.l.b16 %v164
    %v425 = vunpack.c.h.b16 %v164
    %v426 = vunpack.c.l.b16 %v165
    %v427 = vunpack.c.h.b16 %v165
    %v428 = vunpack.c.l.b16 %v166
    %v429 = vunpack.c.h.b16 %v166
    %v430 = vunpack.c.l.b16 %v167
    %v431 = vunpack.c.h.b16 %v167
    %v432 = vunpack.c.l.b16 %v168
    %v433 = vunpack.c.h.b16 %v168
    %v434 = vunpack.c.l.b16 %v169
    %v435 = vunpack.c.h.b16 %v169
    %v436 = vunpack.c.l.b16 %v170
    %v437 = vunpack.c.h.b16 %v170
    %v438 = vunpack.c.l.b16 %v171
    %v439 = vunpack.c.h.b16 %v171
    %v440 = vunpack.c.l.b16 %v172
    %v441 = vunpack.c.h.b16 %v172
    %v442 = vunpack.c.l.b16 %v173
    %v443 = vunpack.c.h.b16 %v173
    %v444 = vunpack.c.l.b16 %v174
    %v445 = vunpack.c.h.b16 %v174
    %v446 = vunpack.c.l.b16 %v175
    %v447 = vunpack.c.h.b16 %v175
    %v448 = vunpack.c.l.b16 %v176
    %v449 = vunpack.c.h.b16 %v176
    %v450 = vunpack.c.l.b16 %v177
    %v451 = vunpack.c.h.b16 %v177
    %v452 = vunpack.c.l.b16 %v178
    %v453 = vunpack.c.h.b16 %v178
    %v454 = vunpack.c.l.b16 %v179
    %v455 = vunpack.c.h.b16 %v179
    %v456 = vunpack.c.l.b16 %v180
    %v457 = vunpack.c.h.b16 %v180
    %v458 = vunpack.c.l.b16 %v181
    %v459 = vunpack.c.h.b16 %v181
    %v460 = vunpack.c.l.b16 %v182
    %v461 = vunpack.c.h.b16 %v182
    %v462 = vunpack.c.l.b16 %v183
    %v463 = vunpack.c.h.b16 %v183
    %v464 = vunpack.c.l.b16 %v184
    %v465 = vunpack.c.h.b16 %v184
    %v466 = vunpack.c.l.b16 %v185
    %v467 = vunpack.c.h.b16 %v185
    %v468 = vunpack.c.l.b16 %v186
    %v469 = vunpack.c.h.b16 %v186
    %v470 = vunpack.c.l.b16 %v187
    %v471 = vunpack.c.h.b16 %v187
    %v472 = vunpack.c.l.b16 %v188
    %v473 = vunpack.c.h.b16 %v188
    %v474 = vunpack.c.l.b16 %v189
    %v475 = vunpack.c.h.b16 %v189
    %v476 = vunpack.c.l.b16 %v190
    %v477 = vunpack.c.h.b16 %v190
    %v478 = vunpack.c.l.b16 %v191
    %v479 = vunpack.c.h.b16 %v191
    %v480 = vunpack.c.l.b16 %v192
    %v481 = vunpack.c.h.b16 %v192
    %v482 = vunpack.c.l.b16 %v193
    %v483 = vunpack.c.h.b16 %v193
    %v484 = vunpack.c.l.b16 %v194
    %v485 = vunpack.c.h.b16 %v194
    %v486 = vunpack.c.l.b16 %v195
    %v487 = vunpack.c.h.b16 %v195
    %v488 = vunpack.c.l.b16 %v196
    %v489 = vunpack.c.h.b16 %v196
    %v490 = vunpack.c.l.b16 %v197
    %v491 = vunpack.c.h.b16 %v197
    %v492 = vunpack.c.l.b16 %v198
    %v493 = vunpack.c.h.b16 %v198
    %v494 = vunpack.c.l.b16 %v199
    %v495 = vunpack.c.h.b16 %v199
    %v496 = vunpack.c.l.b16 %v200
    %v497 = vunpack.c.h.b16 %v200
    %v498 = vunpack.c.l.b16 %v201
    %v499 = vunpack.c.h.b16 %v201
    %v500 = vunpack.c.l.b16 %v202
    %v501 = vunpack.c.h.b16 %v202
    %v502 = vunpack.c.l.b16 %v203
    %v503 = vunpack.c.h.b16 %v203
    %v504 = vunpack.c.l.b16 %v204
    %v505 = vunpack.c.h.b16 %v204
    %v506 = vunpack.c.l.b16 %v205
    %v507 = vunpack.c.h.b16 %v205
    %v508 = vunpack.c.l.b16 %v206
    %v509 = vunpack.c.h.b16 %v206
    %v510 = vunpack.c.l.b16 %v207
    %v511 = vunpack.c.h.b16 %v207
    %v512 = vunpack.c.l.b16 %v208
    %v513 = vunpack.c.h.b16 %v208
    %v514 = vunpack.c.l.b16 %v209
    %v515 = vunpack.c.h.b16 %v209
    %v516 = vunpack.c.l.b16 %v210
    %v517 = vunpack.c.h.b16 %v210
    %v518 = vunpack.c.l.b16 %v211
    %v519 = vunpack.c.h.b16 %v211
    %v520 = vunpack.c.l.b16 %v212
    %v521 = vunpack.c.h.b16 %v212
    %v522 = vunpack.c.l.b16 %v213
    %v523 = vunpack.c.h.b16 %v213
    %v524 = vunpack.c.l.b16 %v214
    %v525 = vunpack.c.h.b16 %v214
    %v526 = vunpack.c.l.b16 %v215
    %v527 = vunpack.c.h.b16 %v215
    %v528 = vunpack.c.l.b16 %v216
    %v529 = vunpack.c.h.b16 %v216
    %v530 = vunpack.c.l.b16 %v217
    %v531 = vunpack.c.h.b16 %v217
    %v532 = vunpack.c.l.b16 %v218
    %v533 = vunpack.c.h.b16 %v218
    %v534 = vunpack.c.l.b16 %v219
    %v535 = vunpack.c.h.b16 %v219
    %v536 = vunpack.c.l.b16 %v220
    %v537 = vunpack.c.h.b16 %v220
    %v538 = vunpack.c.l.b16 %v221
    %v539 = vunpack.c.h.b16 %v221
    %v540 = vpack.c.b16 %v332, %v328
    %v541 = vpack.c.b16 %v333, %v329
    %v542 = vpack.c.b16 %v334, %v330
    %v543 = vpack.c.b16 %v335, %v331
    %v544 = vpack.c.b16 %v340, %v336
    %v545 = vpack.c.b16 %v341, %v337
    %v546 = vpack.c.b16 %v342, %v338
    %v547 = vpack.c.b16 %v343, %v339
    %v548 = vpack.c.b16 %v348, %v344
    %v549 = vpack.c.b16 %v349, %v345
    %v550 = vpack.c.b16 %v350, %v346
    %v551 = vpack.c.b16 %v351, %v347
    %v552 = vpack.c.b16 %v356, %v352
    %v553 = vpack.c.b16 %v357, %v353
    %v554 = vpack.c.b16 %v358, %v354
    %v555 = vpack.c.b16 %v359, %v355
    %v556 = vpack.c.b16 %v364, %v360
    %v557 = vpack.c.b16 %v365, %v361
    %v558 = vpack.c.b16 %v366, %v362
    %v559 = vpack.c.b16 %v367, %v363
    %v560 = vpack.c.b16 %v372, %v368
    %v561 = vpack.c.b16 %v373, %v369
    %v562 = vpack.c.b16 %v374, %v370
    %v563 = vpack.c.b16 %v375, %v371
    %v564 = vpack.c.b16 %v380, %v376
    %v565 = vpack.c.b16 %v381, %v377
    %v566 = vpack.c.b16 %v382, %v378
    %v567 = vpack.c.b16 %v383, %v379
    %v568 = vpack.c.b16 %v388, %v384
    %v569 = vpack.c.b16 %v389, %v385
    %v570 = vpack.c.b16 %v390, %v386
    %v571 = vpack.c.b16 %v391, %v387
    %v572 = vpack.c.b16 %v396, %v392
    %v573 = vpack.c.b16 %v397, %v393
    %v574 = vpack.c.b16 %v398, %v394
    %v575 = vpack.c.b16 %v399, %v395
    %v576 = vpack.c.b16 %v404, %v400
    %v577 = vpack.c.b16 %v405, %v401
    %v578 = vpack.c.b16 %v406, %v402
    %v579 = vpack.c.b16 %v407, %v403
    %v580 = vpack.c.b16 %v412, %v408
    %v581 = vpack.c.b16 %v413, %v409
    %v582 = vpack.c.b16 %v414, %v410
    %v583 = vpack.c.b16 %v415, %v411
    %v584 = vpack.c.b16 %v420, %v416
    %v585 = vpack.c.b16 %v421, %v417
    %v586 = vpack.c.b16 %v422, %v418
    %v587 = vpack.c.b16 %v423, %v419
    %v588 = vpack.c.b16 %v428, %v424
    %v589 = vpack.c.b16 %v429, %v425
    %v590 = vpack.c.b16 %v430, %v426
    %v591 = vpack.c.b16 %v431, %v427
    %v592 = vpack.c.b16 %v436, %v432
    %v593 = vpack.c.b16 %v437, %v433
    %v594 = vpack.c.b16 %v438, %v434
    %v595 = vpack.c.b16 %v439, %v435
    %v596 = vpack.c.b16 %v444, %v440
    %v597 = vpack.c.b16 %v445, %v441
    %v598 = vpack.c.b16 %v446, %v442
    %v599 = vpack.c.b16 %v447, %v443
    %v600 = vpack.c.b16 %v452, %v448
    %v601 = vpack.c.b16 %v453, %v449
    %v602 = vpack.c.b16 %v454, %v450
    %v603 = vpack.c.b16 %v455, %v451
    %v604 = vpack.c.b16 %v460, %v456
    %v605 = vpack.c.b16 %v461, %v457
    %v606 = vpack.c.b16 %v462, %v458
    %v607 = vpack.c.b16 %v463, %v459
    %v608 = vpack.c.b16 %v468, %v464
    %v609 = vpack.c.b16 %v469, %v465
    %v610 = vpack.c.b16 %v470, %v466
    %v611 = vpack.c.b16 %v471, %v467
    %v612 = vpack.c.b16 %v476, %v472
    %v613 = vpack.c.b16 %v477, %v473
    %v614 = vpack.c.b16 %v478, %v474
    %v615 = vpack.c.b16 %v479, %v475
    %v616 = vpack.c.b16 %v484, %v480
    %v617 = vpack.c.b16 %v485, %v481
    %v618 = vpack.c.b16 %v486, %v482
    %v619 = vpack.c.b16 %v487, %v483
    %v620 = vpack.c.b16 %v492, %v488
    %v621 = vpack.c.b16 %v493, %v489
    %v622 = vpack.c.b16 %v494, %v490
    %v623 = vpack.c.b16 %v495, %v491
    %v624 = vpack.c.b16 %v500, %v496
    %v625 = vpack.c.b16 %v501, %v497
    %v626 = vpack.c.b16 %v502, %v498
    %v627 = vpack.c.b16 %v503, %v499
    %v628 = vpack.c.b16 %v508, %v504
    %v629 = vpack.c.b16 %v509, %v505
    %v630 = vpack.c.b16 %v510, %v506
    %v631 = vpack.c.b16 %v511, %v507
    %v632 = vpack.c.b16 %v516, %v512
    %v633 = vpack.c.b16 %v517, %v513
    %v634 = vpack.c.b16 %v518, %v514
    %v635 = vpack.c.b16 %v519, %v515
    %v636 = vpack.c.b16 %v524, %v520
    %v637 = vpack.c.b16 %v525, %v521
    %v638 = vpack.c.b16 %v526, %v522
    %v639 = vpack.c.b16 %v527, %v523
    %v640 = vpack.c.b16 %v532, %v528
    %v641 = vpack.c.b16 %v533, %v529
    %v642 = vpack.c.b16 %v534, %v530
    %v643 = vpack.c.b16 %v535, %v531
    %v644 = vpack.c.b16 %v536, %v536
    %v645 = vpack.c.b16 %v537, %v537
    %v646 = vpack.c.b16 %v538, %v538
    %v647 = vpack.c.b16 %v539, %v539
    %vm752 = vcmask 293888
    %v754 = vsel %vm752, %v115, 0
    %vm756 = vcmask 1041408
    %v758 = vsel %vm756, %v644, 0
    %v761 = vsel %vm756, %v645, 0
    %v764 = vsel %vm756, %v646, 0
    %v767 = vsel %vm756, %v647, 0
    %769 = vmatpush.bf16.msra.mxu0 %v568
    %770 = vmatpush.bf16.msra.mxu0 %v564
    %771 = vmatpush.bf16.msra.mxu0 %v560
    %772 = vmatpush.bf16.msra.mxu0 %v556
    %773 = vmatpush.bf16.msra.mxu0 %v552
    %774 = vmatpush.bf16.msra.mxu0 %v548
    %775 = vmatpush.bf16.msra.mxu0 %v544
    %776 = vmatpush.bf16.msra.mxu0 %v540
    %777 = vmatmul.bf16.gmra.mxu0 %v112
    %v778 = vpop.f32.mrf.mxu0
    %v779 = vadd.f32 0.0, %v778
    %v780 = vpop.f32.mrf.mxu0
    %781 = vdwg.mxu0
    %782 = vmatpush.bf16.msra.mxu0 %v600
    %783 = vmatpush.bf16.msra.mxu0 %v596
    %784 = vmatpush.bf16.msra.mxu0 %v592
    %785 = vmatpush.bf16.msra.mxu0 %v588
    %786 = vmatpush.bf16.msra.mxu0 %v584
    %787 = vmatpush.bf16.msra.mxu0 %v580
    %788 = vmatpush.bf16.msra.mxu0 %v576
    %789 = vmatpush.bf16.msra.mxu0 %v572
    %790 = vmatmul.bf16.gmra.mxu0 %v113
    %v791 = vpop.f32.mrf.mxu0
    %v792 = vadd.f32 %v779, %v791
    %v793 = vpop.f32.mrf.mxu0
    %794 = vdwg.mxu0
    %795 = vmatpush.bf16.msra.mxu0 %v632
    %796 = vmatpush.bf16.msra.mxu0 %v628
    %797 = vmatpush.bf16.msra.mxu0 %v624
    %798 = vmatpush.bf16.msra.mxu0 %v620
    %799 = vmatpush.bf16.msra.mxu0 %v616
    %800 = vmatpush.bf16.msra.mxu0 %v612
    %801 = vmatpush.bf16.msra.mxu0 %v608
    %802 = vmatpush.bf16.msra.mxu0 %v604
    %803 = vmatmul.bf16.gmra.mxu0 %v114
    %v804 = vpop.f32.mrf.mxu0
    %v805 = vadd.f32 %v792, %v804
    %v806 = vpop.f32.mrf.mxu0
    %807 = vdwg.mxu0
    %808 = vmatpush.bf16.msra.mxu0 0
    %809 = vmatpush.bf16.msra.mxu0 0
    %810 = vmatpush.bf16.msra.mxu0 0
    %811 = vmatpush.bf16.msra.mxu0 0
    %812 = vmatpush.bf16.msra.mxu0 0
    %813 = vmatpush.bf16.msra.mxu0 %v758
    %814 = vmatpush.bf16.msra.mxu0 %v640
    %815 = vmatpush.bf16.msra.mxu0 %v636
    %816 = vmatmul.bf16.gmra.mxu0 %v754
    %v817 = vpop.f32.mrf.mxu0
    %v818 = vadd.f32 %v805, %v817
    %v819 = vpop.f32.mrf.mxu0
    %820 = vdwg.mxu0
    %821 = vmatpush.bf16.msra.mxu0 %v569
    %822 = vmatpush.bf16.msra.mxu0 %v565
    %823 = vmatpush.bf16.msra.mxu0 %v561
    %824 = vmatpush.bf16.msra.mxu0 %v557
    %825 = vmatpush.bf16.msra.mxu0 %v553
    %826 = vmatpush.bf16.msra.mxu0 %v549
    %827 = vmatpush.bf16.msra.mxu0 %v545
    %828 = vmatpush.bf16.msra.mxu0 %v541
    %829 = vmatmul.bf16.gmra.mxu0 %v112
    %v830 = vpop.f32.mrf.mxu0
    %v831 = vadd.f32 0.0, %v830
    %v832 = vpop.f32.mrf.mxu0
    %833 = vdwg.mxu0
    %834 = vmatpush.bf16.msra.mxu0 %v601
    %835 = vmatpush.bf16.msra.mxu0 %v597
    %836 = vmatpush.bf16.msra.mxu0 %v593
    %837 = vmatpush.bf16.msra.mxu0 %v589
    %838 = vmatpush.bf16.msra.mxu0 %v585
    %839 = vmatpush.bf16.msra.mxu0 %v581
    %840 = vmatpush.bf16.msra.mxu0 %v577
    %841 = vmatpush.bf16.msra.mxu0 %v573
    %842 = vmatmul.bf16.gmra.mxu0 %v113
    %v843 = vpop.f32.mrf.mxu0
    %v844 = vadd.f32 %v831, %v843
    %v845 = vpop.f32.mrf.mxu0
    %846 = vdwg.mxu0
    %847 = vmatpush.bf16.msra.mxu0 %v633
    %848 = vmatpush.bf16.msra.mxu0 %v629
    %849 = vmatpush.bf16.msra.mxu0 %v625
    %850 = vmatpush.bf16.msra.mxu0 %v621
    %851 = vmatpush.bf16.msra.mxu0 %v617
    %852 = vmatpush.bf16.msra.mxu0 %v613
    %853 = vmatpush.bf16.msra.mxu0 %v609
    %854 = vmatpush.bf16.msra.mxu0 %v605
    %855 = vmatmul.bf16.gmra.mxu0 %v114
    %v856 = vpop.f32.mrf.mxu0
    %v857 = vadd.f32 %v844, %v856
    %v858 = vpop.f32.mrf.mxu0
    %859 = vdwg.mxu0
    %860 = vmatpush.bf16.msra.mxu0 0
    %861 = vmatpush.bf16.msra.mxu0 0
    %862 = vmatpush.bf16.msra.mxu0 0
    %863 = vmatpush.bf16.msra.mxu0 0
    %864 = vmatpush.bf16.msra.mxu0 0
    %865 = vmatpush.bf16.msra.mxu0 %v761
    %866 = vmatpush.bf16.msra.mxu0 %v641
    %867 = vmatpush.bf16.msra.mxu0 %v637
    %868 = vmatmul.bf16.gmra.mxu0 %v754
    %v869 = vpop.f32.mrf.mxu0
    %v870 = vadd.f32 %v857, %v869
    %v871 = vpop.f32.mrf.mxu0
    %872 = vdwg.mxu0
    %873 = vmatpush.bf16.msra.mxu0 %v570
    %874 = vmatpush.bf16.msra.mxu0 %v566
    %875 = vmatpush.bf16.msra.mxu0 %v562
    %876 = vmatpush.bf16.msra.mxu0 %v558
    %877 = vmatpush.bf16.msra.mxu0 %v554
    %878 = vmatpush.bf16.msra.mxu0 %v550
    %879 = vmatpush.bf16.msra.mxu0 %v546
    %880 = vmatpush.bf16.msra.mxu0 %v542
    %881 = vmatmul.bf16.gmra.mxu0 %v112
    %v882 = vpop.f32.mrf.mxu0
    %v883 = vadd.f32 0.0, %v882
    %v884 = vpop.f32.mrf.mxu0
    %885 = vdwg.mxu0
    %886 = vmatpush.bf16.msra.mxu0 %v602
    %887 = vmatpush.bf16.msra.mxu0 %v598
    %888 = vmatpush.bf16.msra.mxu0 %v594
    %889 = vmatpush.bf16.msra.mxu0 %v590
    %890 = vmatpush.bf16.msra.mxu0 %v586
    %891 = vmatpush.bf16.msra.mxu0 %v582
    %892 = vmatpush.bf16.msra.mxu0 %v578
    %893 = vmatpush.bf16.msra.mxu0 %v574
    %894 = vmatmul.bf16.gmra.mxu0 %v113
    %v895 = vpop.f32.mrf.mxu0
    %v896 = vadd.f32 %v883, %v895
    %v897 = vpop.f32.mrf.mxu0
    %898 = vdwg.mxu0
    %899 = vmatpush.bf16.msra.mxu0 %v634
    %900 = vmatpush.bf16.msra.mxu0 %v630
    %901 = vmatpush.bf16.msra.mxu0 %v626
    %902 = vmatpush.bf16.msra.mxu0 %v622
    %903 = vmatpush.bf16.msra.mxu0 %v618
    %904 = vmatpush.bf16.msra.mxu0 %v614
    %905 = vmatpush.bf16.msra.mxu0 %v610
    %906 = vmatpush.bf16.msra.mxu0 %v606
    %907 = vmatmul.bf16.gmra.mxu0 %v114
    %v908 = vpop.f32.mrf.mxu0
    %v909 = vadd.f32 %v896, %v908
    %v910 = vpop.f32.mrf.mxu0
    %911 = vdwg.mxu0
    %912 = vmatpush.bf16.msra.mxu0 0
    %913 = vmatpush.bf16.msra.mxu0 0
    %914 = vmatpush.bf16.msra.mxu0 0
    %915 = vmatpush.bf16.msra.mxu0 0
    %916 = vmatpush.bf16.msra.mxu0 0
    %917 = vmatpush.bf16.msra.mxu0 %v764
    %918 = vmatpush.bf16.msra.mxu0 %v642
    %919 = vmatpush.bf16.msra.mxu0 %v638
    %920 = vmatmul.bf16.gmra.mxu0 %v754
    %v921 = vpop.f32.mrf.mxu0
    %v922 = vadd.f32 %v909, %v921
    %v923 = vpop.f32.mrf.mxu0
    %924 = vdwg.mxu0
    %925 = vmatpush.bf16.msra.mxu0 %v571
    %926 = vmatpush.bf16.msra.mxu0 %v567
    %927 = vmatpush.bf16.msra.mxu0 %v563
    %928 = vmatpush.bf16.msra.mxu0 %v559
    %929 = vmatpush.bf16.msra.mxu0 %v555
    %930 = vmatpush.bf16.msra.mxu0 %v551
    %931 = vmatpush.bf16.msra.mxu0 %v547
    %932 = vmatpush.bf16.msra.mxu0 %v543
    %933 = vmatmul.bf16.gmra.mxu0 %v112
    %v934 = vpop.f32.mrf.mxu0
    %v935 = vadd.f32 0.0, %v934
    %v936 = vpop.f32.mrf.mxu0
    %937 = vdwg.mxu0
    %938 = vmatpush.bf16.msra.mxu0 %v603
    %939 = vmatpush.bf16.msra.mxu0 %v599
    %940 = vmatpush.bf16.msra.mxu0 %v595
    %941 = vmatpush.bf16.msra.mxu0 %v591
    %942 = vmatpush.bf16.msra.mxu0 %v587
    %943 = vmatpush.bf16.msra.mxu0 %v583
    %944 = vmatpush.bf16.msra.mxu0 %v579
    %945 = vmatpush.bf16.msra.mxu0 %v575
    %946 = vmatmul.bf16.gmra.mxu0 %v113
    %v947 = vpop.f32.mrf.mxu0
    %v948 = vadd.f32 %v935, %v947
    %v949 = vpop.f32.mrf.mxu0
    %950 = vdwg.mxu0
    %951 = vmatpush.bf16.msra.mxu0 %v635
    %952 = vmatpush.bf16.msra.mxu0 %v631
    %953 = vmatpush.bf16.msra.mxu0 %v627
    %954 = vmatpush.bf16.msra.mxu0 %v623
    %955 = vmatpush.bf16.msra.mxu0 %v619
    %956 = vmatpush.bf16.msra.mxu0 %v615
    %957 = vmatpush.bf16.msra.mxu0 %v611
    %958 = vmatpush.bf16.msra.mxu0 %v607
    %959 = vmatmul.bf16.gmra.mxu0 %v114
    %v960 = vpop.f32.mrf.mxu0
    %v961 = vadd.f32 %v948, %v960
    %v962 = vpop.f32.mrf.mxu0
    %963 = vdwg.mxu0
    %964 = vmatpush.bf16.msra.mxu0 0
    %965 = vmatpush.bf16.msra.mxu0 0
    %966 = vmatpush.bf16.msra.mxu0 0
    %967 = vmatpush.bf16.msra.mxu0 0
    %968 = vmatpush.bf16.msra.mxu0 0
    %969 = vmatpush.bf16.msra.mxu0 %v767
    %970 = vmatpush.bf16.msra.mxu0 %v643
    %971 = vmatpush.bf16.msra.mxu0 %v639
    %972 = vmatmul.bf16.gmra.mxu0 %v754
    %v973 = vpop.f32.mrf.mxu0
    %v974 = vadd.f32 %v961, %v973
    %v975 = vpop.f32.mrf.mxu0
    %976 = vdwg.mxu0
    %v977 = vpack.c.bf16 %v870, %v818
    %v978 = vpack.c.bf16 %v974, %v922
    %v979 = vld [vmem:[#allocation7] sm:$0xf]
    %981 = vst [vmem:[#allocation1] ss:$9 sm:$0xff] %v979
    %v982 = vld [vmem:[#allocation1] sm:$0xff]
    %v983 = vld [vmem:[#allocation1 + $0x9] sm:$0xff]
    %v984 = vld [vmem:[#allocation1 + $0x12] sm:$0xff]
    %v985 = vld [vmem:[#allocation1 + $0x1b] sm:$0xff]
    %v986 = vpack.i.b16 %v982, %v982
    %v988 = vperm.slane %v986, 0
    %v989 = vpack.i.b16 %v983, %v983
    %v991 = vperm.slane %v989, 0
    %v992 = vpack.i.b16 %v984, %v984
    %v994 = vperm.slane %v992, 0
    %v995 = vpack.i.b16 %v985, %v985
    %v997 = vperm.slane %v995, 0
    %v998 = vunpack.c.l.bf16 %v977
    %v999 = vunpack.c.h.bf16 %v977
    %v1000 = vunpack.c.l.bf16 %v978
    %v1001 = vunpack.c.h.bf16 %v978
    %v1002 = vunpack.c.l.bf16 %v988
    %v1003 = vunpack.c.l.bf16 %v991
    %v1004 = vunpack.c.l.bf16 %v994
    %v1005 = vunpack.c.l.bf16 %v997
    %v1006 = vadd.f32 %v998, %v1002
    %v1007 = vadd.f32 %v999, %v1003
    %v1008 = vadd.f32 %v1000, %v1004
    %v1009 = vadd.f32 %v1001, %v1005
    %v1010 = vpack.c.bf16 %v1007, %v1006
    %v1011 = vpack.c.bf16 %v1009, %v1008
    %v1012 = vunpack.c.l.bf16 %v1010
    %v1013 = vunpack.c.h.bf16 %v1010
    %v1014 = vunpack.c.l.bf16 %v1011
    %v1015 = vunpack.c.h.bf16 %v1011
    %v1016 = vmax.f32 %v1012, 0.0
    %v1017 = vmax.f32 %v1013, 0.0
    %v1018 = vmax.f32 %v1014, 0.0
    %v1019 = vmax.f32 %v1015, 0.0
    %v1020 = vpack.c.bf16 %v1016, %v1016
    %v1021 = vpack.c.bf16 %v1017, %v1017
    %v1022 = vpack.c.bf16 %v1018, %v1018
    %v1023 = vpack.c.bf16 %v1019, %v1019
    %v1024 = vld [vmem:[#allocation8] sm:$0xff]
    %v1025 = vld [vmem:[#allocation8 + $0x8] sm:$0xff]
    %v1026 = vld [vmem:[#allocation8 + $0x10] sm:$0xff]
    %v1027 = vld [vmem:[#allocation8 + $0x18] sm:$0xff]
    %v1028 = vld [vmem:[#allocation8 + $0x20] sm:$0xff]
    %v1029 = vld [vmem:[#allocation8 + $0x28] sm:$0xff]
    %v1030 = vld [vmem:[#allocation8 + $0x30] sm:$0xff]
    %v1031 = vld [vmem:[#allocation8 + $0x38] sm:$0xff]
    %v1032 = vld [vmem:[#allocation8 + $0x40] sm:$0xff]
    %v1033 = vld [vmem:[#allocation8 + $0x48] sm:$0xff]
    %v1034 = vld [vmem:[#allocation8 + $0x50] sm:$0xff]
    %v1035 = vld [vmem:[#allocation8 + $0x58] sm:$0xff]
    %v1036 = vld [vmem:[#allocation8 + $0x60] sm:$0xff]
    %v1037 = vld [vmem:[#allocation8 + $0x68] sm:$0xff]
    %v1038 = vld [vmem:[#allocation8 + $0x70] sm:$0xff]
    %v1039 = vld [vmem:[#allocation8 + $0x78] sm:$0xff]
    %v1040 = vld [vmem:[#allocation8 + $0x80] sm:$0xff]
    %v1041 = vld [vmem:[#allocation8 + $0x88] sm:$0xff]
    %v1042 = vld [vmem:[#allocation8 + $0x90] sm:$0xff]
    %v1043 = vld [vmem:[#allocation8 + $0x98] sm:$0xff]
    %v1044 = vld [vmem:[#allocation8 + $0xa0] sm:$0xff]
    %v1045 = vld [vmem:[#allocation8 + $0xa8] sm:$0xff]
    %v1046 = vld [vmem:[#allocation8 + $0xb0] sm:$0xff]
    %v1047 = vld [vmem:[#allocation8 + $0xb8] sm:$0xff]
    %v1048 = vld [vmem:[#allocation8 + $0xc0] sm:$0xff]
    %v1049 = vld [vmem:[#allocation8 + $0xc8] sm:$0xff]
    %v1050 = vld [vmem:[#allocation8 + $0xd0] sm:$0xff]
    %v1051 = vld [vmem:[#allocation8 + $0xd8] sm:$0xff]
    %v1052 = vld [vmem:[#allocation8 + $0xe0] sm:$0xff]
    %v1053 = vld [vmem:[#allocation8 + $0xe8] sm:$0xff]
    %v1054 = vld [vmem:[#allocation8 + $0xf0] sm:$0xff]
    %v1055 = vld [vmem:[#allocation8 + $0xf8] sm:$0xff]
    %v1056 = vld [vmem:[#allocation8 + $0x100] sm:$0xff]
    %v1057 = vld [vmem:[#allocation8 + $0x108] sm:$0xff]
    %v1058 = vld [vmem:[#allocation8 + $0x110] sm:$0xff]
    %v1059 = vld [vmem:[#allocation8 + $0x118] sm:$0xff]
    %v1060 = vld [vmem:[#allocation8 + $0x120] sm:$0xff]
    %v1061 = vld [vmem:[#allocation8 + $0x128] sm:$0xff]
    %v1062 = vld [vmem:[#allocation8 + $0x130] sm:$0xff]
    %v1063 = vld [vmem:[#allocation8 + $0x138] sm:$0xff]
    %v1064 = vld [vmem:[#allocation8 + $0x140] sm:$0xff]
    %v1065 = vld [vmem:[#allocation8 + $0x148] sm:$0xff]
    %v1066 = vld [vmem:[#allocation8 + $0x150] sm:$0xff]
    %v1067 = vld [vmem:[#allocation8 + $0x158] sm:$0xff]
    %v1068 = vld [vmem:[#allocation8 + $0x160] sm:$0xff]
    %v1069 = vld [vmem:[#allocation8 + $0x168] sm:$0xff]
    %v1070 = vld [vmem:[#allocation8 + $0x170] sm:$0xff]
    %v1071 = vld [vmem:[#allocation8 + $0x178] sm:$0xff]
    %v1072 = vld [vmem:[#allocation8 + $0x180] sm:$0xff]
    %v1073 = vld [vmem:[#allocation8 + $0x188] sm:$0xff]
    %v1074 = vld [vmem:[#allocation8 + $0x190] sm:$0xff]
    %v1075 = vld [vmem:[#allocation8 + $0x198] sm:$0xff]
    %v1076 = vld [vmem:[#allocation8 + $0x1a0] sm:$0xff]
    %v1077 = vld [vmem:[#allocation8 + $0x1a8] sm:$0xff]
    %v1078 = vld [vmem:[#allocation8 + $0x1b0] sm:$0xff]
    %v1079 = vld [vmem:[#allocation8 + $0x1b8] sm:$0xff]
    %v1080 = vld [vmem:[#allocation8 + $0x1c0] sm:$0xff]
    %v1081 = vld [vmem:[#allocation8 + $0x1c8] sm:$0xff]
    %v1082 = vld [vmem:[#allocation8 + $0x1d0] sm:$0xff]
    %v1083 = vld [vmem:[#allocation8 + $0x1d8] sm:$0xff]
    %v1084 = vld [vmem:[#allocation8 + $0x1e0] sm:$0xff]
    %v1085 = vld [vmem:[#allocation8 + $0x1e8] sm:$0xff]
    %v1086 = vld [vmem:[#allocation8 + $0x1f0] sm:$0xff]
    %v1087 = vld [vmem:[#allocation8 + $0x1f8] sm:$0xff]
    %v1152 = vunpack.c.l.b16 %v1024
    %v1153 = vunpack.c.h.b16 %v1024
    %v1154 = vunpack.c.l.b16 %v1025
    %v1155 = vunpack.c.h.b16 %v1025
    %v1156 = vunpack.c.l.b16 %v1026
    %v1157 = vunpack.c.h.b16 %v1026
    %v1158 = vunpack.c.l.b16 %v1027
    %v1159 = vunpack.c.h.b16 %v1027
    %v1160 = vunpack.c.l.b16 %v1028
    %v1161 = vunpack.c.h.b16 %v1028
    %v1162 = vunpack.c.l.b16 %v1029
    %v1163 = vunpack.c.h.b16 %v1029
    %v1164 = vunpack.c.l.b16 %v1030
    %v1165 = vunpack.c.h.b16 %v1030
    %v1166 = vunpack.c.l.b16 %v1031
    %v1167 = vunpack.c.h.b16 %v1031
    %v1168 = vunpack.c.l.b16 %v1032
    %v1169 = vunpack.c.h.b16 %v1032
    %v1170 = vunpack.c.l.b16 %v1033
    %v1171 = vunpack.c.h.b16 %v1033
    %v1172 = vunpack.c.l.b16 %v1034
    %v1173 = vunpack.c.h.b16 %v1034
    %v1174 = vunpack.c.l.b16 %v1035
    %v1175 = vunpack.c.h.b16 %v1035
    %v1176 = vunpack.c.l.b16 %v1036
    %v1177 = vunpack.c.h.b16 %v1036
    %v1178 = vunpack.c.l.b16 %v1037
    %v1179 = vunpack.c.h.b16 %v1037
    %v1180 = vunpack.c.l.b16 %v1038
    %v1181 = vunpack.c.h.b16 %v1038
    %v1182 = vunpack.c.l.b16 %v1039
    %v1183 = vunpack.c.h.b16 %v1039
    %v1184 = vunpack.c.l.b16 %v1040
    %v1185 = vunpack.c.h.b16 %v1040
    %v1186 = vunpack.c.l.b16 %v1041
    %v1187 = vunpack.c.h.b16 %v1041
    %v1188 = vunpack.c.l.b16 %v1042
    %v1189 = vunpack.c.h.b16 %v1042
    %v1190 = vunpack.c.l.b16 %v1043
    %v1191 = vunpack.c.h.b16 %v1043
    %v1192 = vunpack.c.l.b16 %v1044
    %v1193 = vunpack.c.h.b16 %v1044
    %v1194 = vunpack.c.l.b16 %v1045
    %v1195 = vunpack.c.h.b16 %v1045
    %v1196 = vunpack.c.l.b16 %v1046
    %v1197 = vunpack.c.h.b16 %v1046
    %v1198 = vunpack.c.l.b16 %v1047
    %v1199 = vunpack.c.h.b16 %v1047
    %v1200 = vunpack.c.l.b16 %v1048
    %v1201 = vunpack.c.h.b16 %v1048
    %v1202 = vunpack.c.l.b16 %v1049
    %v1203 = vunpack.c.h.b16 %v1049
    %v1204 = vunpack.c.l.b16 %v1050
    %v1205 = vunpack.c.h.b16 %v1050
    %v1206 = vunpack.c.l.b16 %v1051
    %v1207 = vunpack.c.h.b16 %v1051
    %v1208 = vunpack.c.l.b16 %v1052
    %v1209 = vunpack.c.h.b16 %v1052
    %v1210 = vunpack.c.l.b16 %v1053
    %v1211 = vunpack.c.h.b16 %v1053
    %v1212 = vunpack.c.l.b16 %v1054
    %v1213 = vunpack.c.h.b16 %v1054
    %v1214 = vunpack.c.l.b16 %v1055
    %v1215 = vunpack.c.h.b16 %v1055
    %v1216 = vunpack.c.l.b16 %v1056
    %v1217 = vunpack.c.h.b16 %v1056
    %v1218 = vunpack.c.l.b16 %v1057
    %v1219 = vunpack.c.h.b16 %v1057
    %v1220 = vunpack.c.l.b16 %v1058
    %v1221 = vunpack.c.h.b16 %v1058
    %v1222 = vunpack.c.l.b16 %v1059
    %v1223 = vunpack.c.h.b16 %v1059
    %v1224 = vunpack.c.l.b16 %v1060
    %v1225 = vunpack.c.h.b16 %v1060
    %v1226 = vunpack.c.l.b16 %v1061
    %v1227 = vunpack.c.h.b16 %v1061
    %v1228 = vunpack.c.l.b16 %v1062
    %v1229 = vunpack.c.h.b16 %v1062
    %v1230 = vunpack.c.l.b16 %v1063
    %v1231 = vunpack.c.h.b16 %v1063
    %v1232 = vunpack.c.l.b16 %v1064
    %v1233 = vunpack.c.h.b16 %v1064
    %v1234 = vunpack.c.l.b16 %v1065
    %v1235 = vunpack.c.h.b16 %v1065
    %v1236 = vunpack.c.l.b16 %v1066
    %v1237 = vunpack.c.h.b16 %v1066
    %v1238 = vunpack.c.l.b16 %v1067
    %v1239 = vunpack.c.h.b16 %v1067
    %v1240 = vunpack.c.l.b16 %v1068
    %v1241 = vunpack.c.h.b16 %v1068
    %v1242 = vunpack.c.l.b16 %v1069
    %v1243 = vunpack.c.h.b16 %v1069
    %v1244 = vunpack.c.l.b16 %v1070
    %v1245 = vunpack.c.h.b16 %v1070
    %v1246 = vunpack.c.l.b16 %v1071
    %v1247 = vunpack.c.h.b16 %v1071
    %v1248 = vunpack.c.l.b16 %v1072
    %v1249 = vunpack.c.h.b16 %v1072
    %v1250 = vunpack.c.l.b16 %v1073
    %v1251 = vunpack.c.h.b16 %v1073
    %v1252 = vunpack.c.l.b16 %v1074
    %v1253 = vunpack.c.h.b16 %v1074
    %v1254 = vunpack.c.l.b16 %v1075
    %v1255 = vunpack.c.h.b16 %v1075
    %v1256 = vunpack.c.l.b16 %v1076
    %v1257 = vunpack.c.h.b16 %v1076
    %v1258 = vunpack.c.l.b16 %v1077
    %v1259 = vunpack.c.h.b16 %v1077
    %v1260 = vunpack.c.l.b16 %v1078
    %v1261 = vunpack.c.h.b16 %v1078
    %v1262 = vunpack.c.l.b16 %v1079
    %v1263 = vunpack.c.h.b16 %v1079
    %v1264 = vunpack.c.l.b16 %v1080
    %v1265 = vunpack.c.h.b16 %v1080
    %v1266 = vunpack.c.l.b16 %v1081
    %v1267 = vunpack.c.h.b16 %v1081
    %v1268 = vunpack.c.l.b16 %v1082
    %v1269 = vunpack.c.h.b16 %v1082
    %v1270 = vunpack.c.l.b16 %v1083
    %v1271 = vunpack.c.h.b16 %v1083
    %v1272 = vunpack.c.l.b16 %v1084
    %v1273 = vunpack.c.h.b16 %v1084
    %v1274 = vunpack.c.l.b16 %v1085
    %v1275 = vunpack.c.h.b16 %v1085
    %v1276 = vunpack.c.l.b16 %v1086
    %v1277 = vunpack.c.h.b16 %v1086
    %v1278 = vunpack.c.l.b16 %v1087
    %v1279 = vunpack.c.h.b16 %v1087
    %v1280 = vpack.c.b16 %v1154, %v1152
    %v1281 = vpack.c.b16 %v1155, %v1153
    %v1282 = vpack.c.b16 %v1158, %v1156
    %v1283 = vpack.c.b16 %v1159, %v1157
    %v1284 = vpack.c.b16 %v1162, %v1160
    %v1285 = vpack.c.b16 %v1163, %v1161
    %v1286 = vpack.c.b16 %v1166, %v1164
    %v1287 = vpack.c.b16 %v1167, %v1165
    %v1288 = vpack.c.b16 %v1170, %v1168
    %v1289 = vpack.c.b16 %v1171, %v1169
    %v1290 = vpack.c.b16 %v1174, %v1172
    %v1291 = vpack.c.b16 %v1175, %v1173
    %v1292 = vpack.c.b16 %v1178, %v1176
    %v1293 = vpack.c.b16 %v1179, %v1177
    %v1294 = vpack.c.b16 %v1182, %v1180
    %v1295 = vpack.c.b16 %v1183, %v1181
    %v1296 = vpack.c.b16 %v1186, %v1184
    %v1297 = vpack.c.b16 %v1187, %v1185
    %v1298 = vpack.c.b16 %v1190, %v1188
    %v1299 = vpack.c.b16 %v1191, %v1189
    %v1300 = vpack.c.b16 %v1194, %v1192
    %v1301 = vpack.c.b16 %v1195, %v1193
    %v1302 = vpack.c.b16 %v1198, %v1196
    %v1303 = vpack.c.b16 %v1199, %v1197
    %v1304 = vpack.c.b16 %v1202, %v1200
    %v1305 = vpack.c.b16 %v1203, %v1201
    %v1306 = vpack.c.b16 %v1206, %v1204
    %v1307 = vpack.c.b16 %v1207, %v1205
    %v1308 = vpack.c.b16 %v1210, %v1208
    %v1309 = vpack.c.b16 %v1211, %v1209
    %v1310 = vpack.c.b16 %v1214, %v1212
    %v1311 = vpack.c.b16 %v1215, %v1213
    %v1312 = vpack.c.b16 %v1218, %v1216
    %v1313 = vpack.c.b16 %v1219, %v1217
    %v1314 = vpack.c.b16 %v1222, %v1220
    %v1315 = vpack.c.b16 %v1223, %v1221
    %v1316 = vpack.c.b16 %v1226, %v1224
    %v1317 = vpack.c.b16 %v1227, %v1225
    %v1318 = vpack.c.b16 %v1230, %v1228
    %v1319 = vpack.c.b16 %v1231, %v1229
    %v1320 = vpack.c.b16 %v1234, %v1232
    %v1321 = vpack.c.b16 %v1235, %v1233
    %v1322 = vpack.c.b16 %v1238, %v1236
    %v1323 = vpack.c.b16 %v1239, %v1237
    %v1324 = vpack.c.b16 %v1242, %v1240
    %v1325 = vpack.c.b16 %v1243, %v1241
    %v1326 = vpack.c.b16 %v1246, %v1244
    %v1327 = vpack.c.b16 %v1247, %v1245
    %v1328 = vpack.c.b16 %v1250, %v1248
    %v1329 = vpack.c.b16 %v1251, %v1249
    %v1330 = vpack.c.b16 %v1254, %v1252
    %v1331 = vpack.c.b16 %v1255, %v1253
    %v1332 = vpack.c.b16 %v1258, %v1256
    %v1333 = vpack.c.b16 %v1259, %v1257
    %v1334 = vpack.c.b16 %v1262, %v1260
    %v1335 = vpack.c.b16 %v1263, %v1261
    %v1336 = vpack.c.b16 %v1266, %v1264
    %v1337 = vpack.c.b16 %v1267, %v1265
    %v1338 = vpack.c.b16 %v1270, %v1268
    %v1339 = vpack.c.b16 %v1271, %v1269
    %v1340 = vpack.c.b16 %v1274, %v1272
    %v1341 = vpack.c.b16 %v1275, %v1273
    %v1342 = vpack.c.b16 %v1278, %v1276
    %v1343 = vpack.c.b16 %v1279, %v1277
    %1408 = vmatpush.bf16.msra.mxu0 %v1294
    %1409 = vmatpush.bf16.msra.mxu0 %v1292
    %1410 = vmatpush.bf16.msra.mxu0 %v1290
    %1411 = vmatpush.bf16.msra.mxu0 %v1288
    %1412 = vmatpush.bf16.msra.mxu0 %v1286
    %1413 = vmatpush.bf16.msra.mxu0 %v1284
    %1414 = vmatpush.bf16.msra.mxu0 %v1282
    %1415 = vmatpush.bf16.msra.mxu0 %v1280
    %1416 = vmatmul.bf16.gmra.mxu0 %v1020
    %v1417 = vpop.f32.mrf.mxu0
    %v1418 = vadd.f32 0.0, %v1417
    %v1419 = vpop.f32.mrf.mxu0
    %1420 = vdwg.mxu0
    %1421 = vmatpush.bf16.msra.mxu0 %v1310
    %1422 = vmatpush.bf16.msra.mxu0 %v1308
    %1423 = vmatpush.bf16.msra.mxu0 %v1306
    %1424 = vmatpush.bf16.msra.mxu0 %v1304
    %1425 = vmatpush.bf16.msra.mxu0 %v1302
    %1426 = vmatpush.bf16.msra.mxu0 %v1300
    %1427 = vmatpush.bf16.msra.mxu0 %v1298
    %1428 = vmatpush.bf16.msra.mxu0 %v1296
    %1429 = vmatmul.bf16.gmra.mxu0 %v1021
    %v1430 = vpop.f32.mrf.mxu0
    %v1431 = vadd.f32 %v1418, %v1430
    %v1432 = vpop.f32.mrf.mxu0
    %1433 = vdwg.mxu0
    %1434 = vmatpush.bf16.msra.mxu0 %v1326
    %1435 = vmatpush.bf16.msra.mxu0 %v1324
    %1436 = vmatpush.bf16.msra.mxu0 %v1322
    %1437 = vmatpush.bf16.msra.mxu0 %v1320
    %1438 = vmatpush.bf16.msra.mxu0 %v1318
    %1439 = vmatpush.bf16.msra.mxu0 %v1316
    %1440 = vmatpush.bf16.msra.mxu0 %v1314
    %1441 = vmatpush.bf16.msra.mxu0 %v1312
    %1442 = vmatmul.bf16.gmra.mxu0 %v1022
    %v1443 = vpop.f32.mrf.mxu0
    %v1444 = vadd.f32 %v1431, %v1443
    %v1445 = vpop.f32.mrf.mxu0
    %1446 = vdwg.mxu0
    %1447 = vmatpush.bf16.msra.mxu0 %v1342
    %1448 = vmatpush.bf16.msra.mxu0 %v1340
    %1449 = vmatpush.bf16.msra.mxu0 %v1338
    %1450 = vmatpush.bf16.msra.mxu0 %v1336
    %1451 = vmatpush.bf16.msra.mxu0 %v1334
    %1452 = vmatpush.bf16.msra.mxu0 %v1332
    %1453 = vmatpush.bf16.msra.mxu0 %v1330
    %1454 = vmatpush.bf16.msra.mxu0 %v1328
    %1455 = vmatmul.bf16.gmra.mxu0 %v1023
    %v1456 = vpop.f32.mrf.mxu0
    %v1457 = vadd.f32 %v1444, %v1456
    %v1458 = vpop.f32.mrf.mxu0
    %1459 = vdwg.mxu0
    %1460 = vmatpush.bf16.msra.mxu0 %v1295
    %1461 = vmatpush.bf16.msra.mxu0 %v1293
    %1462 = vmatpush.bf16.msra.mxu0 %v1291
    %1463 = vmatpush.bf16.msra.mxu0 %v1289
    %1464 = vmatpush.bf16.msra.mxu0 %v1287
    %1465 = vmatpush.bf16.msra.mxu0 %v1285
    %1466 = vmatpush.bf16.msra.mxu0 %v1283
    %1467 = vmatpush.bf16.msra.mxu0 %v1281
    %1468 = vmatmul.bf16.gmra.mxu0 %v1020
    %v1469 = vpop.f32.mrf.mxu0
    %v1470 = vadd.f32 0.0, %v1469
    %v1471 = vpop.f32.mrf.mxu0
    %1472 = vdwg.mxu0
    %1473 = vmatpush.bf16.msra.mxu0 %v1311
    %1474 = vmatpush.bf16.msra.mxu0 %v1309
    %1475 = vmatpush.bf16.msra.mxu0 %v1307
    %1476 = vmatpush.bf16.msra.mxu0 %v1305
    %1477 = vmatpush.bf16.msra.mxu0 %v1303
    %1478 = vmatpush.bf16.msra.mxu0 %v1301
    %1479 = vmatpush.bf16.msra.mxu0 %v1299
    %1480 = vmatpush.bf16.msra.mxu0 %v1297
    %1481 = vmatmul.bf16.gmra.mxu0 %v1021
    %v1482 = vpop.f32.mrf.mxu0
    %v1483 = vadd.f32 %v1470, %v1482
    %v1484 = vpop.f32.mrf.mxu0
    %1485 = vdwg.mxu0
    %1486 = vmatpush.bf16.msra.mxu0 %v1327
    %1487 = vmatpush.bf16.msra.mxu0 %v1325
    %1488 = vmatpush.bf16.msra.mxu0 %v1323
    %1489 = vmatpush.bf16.msra.mxu0 %v1321
    %1490 = vmatpush.bf16.msra.mxu0 %v1319
    %1491 = vmatpush.bf16.msra.mxu0 %v1317
    %1492 = vmatpush.bf16.msra.mxu0 %v1315
    %1493 = vmatpush.bf16.msra.mxu0 %v1313
    %1494 = vmatmul.bf16.gmra.mxu0 %v1022
    %v1495 = vpop.f32.mrf.mxu0
    %v1496 = vadd.f32 %v1483, %v1495
    %v1497 = vpop.f32.mrf.mxu0
    %1498 = vdwg.mxu0
    %1499 = vmatpush.bf16.msra.mxu0 %v1343
    %1500 = vmatpush.bf16.msra.mxu0 %v1341
    %1501 = vmatpush.bf16.msra.mxu0 %v1339
    %1502 = vmatpush.bf16.msra.mxu0 %v1337
    %1503 = vmatpush.bf16.msra.mxu0 %v1335
    %1504 = vmatpush.bf16.msra.mxu0 %v1333
    %1505 = vmatpush.bf16.msra.mxu0 %v1331
    %1506 = vmatpush.bf16.msra.mxu0 %v1329
    %1507 = vmatmul.bf16.gmra.mxu0 %v1023
    %v1508 = vpop.f32.mrf.mxu0
    %v1509 = vadd.f32 %v1496, %v1508
    %v1510 = vpop.f32.mrf.mxu0
    %1511 = vdwg.mxu0
    %v1512 = vpack.c.bf16 %v1509, %v1457
    %v1513 = vld [vmem:[%s4] sm:$0x3]
    %1515 = vst [vmem:[#allocation1] ss:$9 sm:$0xff] %v1513
    %v1516 = vld [vmem:[#allocation1] sm:$0xff]
    %v1517 = vld [vmem:[#allocation1 + $0x9] sm:$0xff]
    %v1518 = vpack.i.b16 %v1516, %v1516
    %v1520 = vperm.slane %v1518, 0
    %v1521 = vpack.i.b16 %v1517, %v1517
    %v1523 = vperm.slane %v1521, 0
    %v1524 = vunpack.c.l.bf16 %v1512
    %v1525 = vunpack.c.h.bf16 %v1512
    %v1526 = vunpack.c.l.bf16 %v1520
    %v1527 = vunpack.c.l.bf16 %v1523
    %v1528 = vadd.f32 %v1524, %v1526
    %v1529 = vadd.f32 %v1525, %v1527
    %v1530 = vpack.c.bf16 %v1529, %v1528
    %v1531 = vunpack.c.l.bf16 %v1530
    %v1532 = vunpack.c.h.bf16 %v1530
    %v1533 = vmax.f32 %v1531, 0.0
    %v1534 = vmax.f32 %v1532, 0.0
    %v1535 = vpack.c.bf16 %v1533, %v1533
    %v1536 = vpack.c.bf16 %v1534, %v1534
    %v1537 = vld [vmem:[#allocation10] sm:$0xf]
    %v1538 = vld [vmem:[#allocation10 + $0x4] sm:$0xf]
    %v1539 = vld [vmem:[#allocation10 + $0x8] sm:$0xf]
    %v1540 = vld [vmem:[#allocation10 + $0xc] sm:$0xf]
    %v1541 = vld [vmem:[#allocation10 + $0x10] sm:$0xf]
    %v1542 = vld [vmem:[#allocation10 + $0x14] sm:$0xf]
    %v1543 = vld [vmem:[#allocation10 + $0x18] sm:$0xf]
    %v1544 = vld [vmem:[#allocation10 + $0x1c] sm:$0xf]
    %v1545 = vld [vmem:[#allocation10 + $0x20] sm:$0xf]
    %v1546 = vld [vmem:[#allocation10 + $0x24] sm:$0xf]
    %v1547 = vld [vmem:[#allocation10 + $0x28] sm:$0xf]
    %v1548 = vld [vmem:[#allocation10 + $0x2c] sm:$0xf]
    %v1549 = vld [vmem:[#allocation10 + $0x30] sm:$0xf]
    %v1550 = vld [vmem:[#allocation10 + $0x34] sm:$0xf]
    %v1551 = vld [vmem:[#allocation10 + $0x38] sm:$0xf]
    %v1552 = vld [vmem:[#allocation10 + $0x3c] sm:$0xf]
    %v1553 = vld [vmem:[#allocation10 + $0x40] sm:$0xf]
    %v1554 = vld [vmem:[#allocation10 + $0x44] sm:$0xf]
    %v1555 = vld [vmem:[#allocation10 + $0x48] sm:$0xf]
    %v1556 = vld [vmem:[#allocation10 + $0x4c] sm:$0xf]
    %v1557 = vld [vmem:[#allocation10 + $0x50] sm:$0xf]
    %v1558 = vld [vmem:[#allocation10 + $0x54] sm:$0xf]
    %v1559 = vld [vmem:[#allocation10 + $0x58] sm:$0xf]
    %v1560 = vld [vmem:[#allocation10 + $0x5c] sm:$0xf]
    %v1561 = vld [vmem:[#allocation10 + $0x60] sm:$0xf]
    %v1562 = vld [vmem:[#allocation10 + $0x64] sm:$0xf]
    %v1563 = vld [vmem:[#allocation10 + $0x68] sm:$0xf]
    %v1564 = vld [vmem:[#allocation10 + $0x6c] sm:$0xf]
    %v1565 = vld [vmem:[#allocation10 + $0x70] sm:$0xf]
    %v1566 = vld [vmem:[#allocation10 + $0x74] sm:$0xf]
    %v1567 = vld [vmem:[#allocation10 + $0x78] sm:$0xf]
    %v1568 = vld [vmem:[#allocation10 + $0x7c] sm:$0xf]
    %v1601 = vunpack.c.l.b16 %v1537
    %v1602 = vunpack.c.l.b16 %v1538
    %v1603 = vunpack.c.l.b16 %v1539
    %v1604 = vunpack.c.l.b16 %v1540
    %v1605 = vunpack.c.l.b16 %v1541
    %v1606 = vunpack.c.l.b16 %v1542
    %v1607 = vunpack.c.l.b16 %v1543
    %v1608 = vunpack.c.l.b16 %v1544
    %v1609 = vunpack.c.l.b16 %v1545
    %v1610 = vunpack.c.l.b16 %v1546
    %v1611 = vunpack.c.l.b16 %v1547
    %v1612 = vunpack.c.l.b16 %v1548
    %v1613 = vunpack.c.l.b16 %v1549
    %v1614 = vunpack.c.l.b16 %v1550
    %v1615 = vunpack.c.l.b16 %v1551
    %v1616 = vunpack.c.l.b16 %v1552
    %v1617 = vunpack.c.l.b16 %v1553
    %v1618 = vunpack.c.l.b16 %v1554
    %v1619 = vunpack.c.l.b16 %v1555
    %v1620 = vunpack.c.l.b16 %v1556
    %v1621 = vunpack.c.l.b16 %v1557
    %v1622 = vunpack.c.l.b16 %v1558
    %v1623 = vunpack.c.l.b16 %v1559
    %v1624 = vunpack.c.l.b16 %v1560
    %v1625 = vunpack.c.l.b16 %v1561
    %v1626 = vunpack.c.l.b16 %v1562
    %v1627 = vunpack.c.l.b16 %v1563
    %v1628 = vunpack.c.l.b16 %v1564
    %v1629 = vunpack.c.l.b16 %v1565
    %v1630 = vunpack.c.l.b16 %v1566
    %v1631 = vunpack.c.l.b16 %v1567
    %v1632 = vunpack.c.l.b16 %v1568
    %v1633 = vpack.c.b16 %v1602, %v1601
    %v1634 = vpack.c.b16 %v1604, %v1603
    %v1635 = vpack.c.b16 %v1606, %v1605
    %v1636 = vpack.c.b16 %v1608, %v1607
    %v1637 = vpack.c.b16 %v1610, %v1609
    %v1638 = vpack.c.b16 %v1612, %v1611
    %v1639 = vpack.c.b16 %v1614, %v1613
    %v1640 = vpack.c.b16 %v1616, %v1615
    %v1641 = vpack.c.b16 %v1618, %v1617
    %v1642 = vpack.c.b16 %v1620, %v1619
    %v1643 = vpack.c.b16 %v1622, %v1621
    %v1644 = vpack.c.b16 %v1624, %v1623
    %v1645 = vpack.c.b16 %v1626, %v1625
    %v1646 = vpack.c.b16 %v1628, %v1627
    %v1647 = vpack.c.b16 %v1630, %v1629
    %v1648 = vpack.c.b16 %v1632, %v1631
    %1665 = vmatpush.bf16.msra.mxu0 %v1640
    %1666 = vmatpush.bf16.msra.mxu0 %v1639
    %1667 = vmatpush.bf16.msra.mxu0 %v1638
    %1668 = vmatpush.bf16.msra.mxu0 %v1637
    %1669 = vmatpush.bf16.msra.mxu0 %v1636
    %1670 = vmatpush.bf16.msra.mxu0 %v1635
    %1671 = vmatpush.bf16.msra.mxu0 %v1634
    %1672 = vmatpush.bf16.msra.mxu0 %v1633
    %1673 = vmatmul.bf16.gmra.mxu0 %v1535
    %v1674 = vpop.f32.mrf.mxu0
    %v1675 = vadd.f32 0.0, %v1674
    %v1676 = vpop.f32.mrf.mxu0
    %1677 = vdwg.mxu0
    %1678 = vmatpush.bf16.msra.mxu0 %v1648
    %1679 = vmatpush.bf16.msra.mxu0 %v1647
    %1680 = vmatpush.bf16.msra.mxu0 %v1646
    %1681 = vmatpush.bf16.msra.mxu0 %v1645
    %1682 = vmatpush.bf16.msra.mxu0 %v1644
    %1683 = vmatpush.bf16.msra.mxu0 %v1643
    %1684 = vmatpush.bf16.msra.mxu0 %v1642
    %1685 = vmatpush.bf16.msra.mxu0 %v1641
    %1686 = vmatmul.bf16.gmra.mxu0 %v1536
    %v1687 = vpop.f32.mrf.mxu0
    %v1688 = vadd.f32 %v1675, %v1687
    %v1689 = vpop.f32.mrf.mxu0
    %1690 = vdwg.mxu0
    %v1691 = vpack.c.bf16 %v1688, %v1688
    %v1692 = vld [vmem:[%s6] sm:$0x1]
    %v1694 = vpack.i.b16 %v1692, %v1692
    %v1696 = vperm.slane %v1694, 0
    %v1697 = vunpack.c.l.bf16 %v1691
    %v1698 = vunpack.c.l.bf16 %v1696
    %v1699 = vadd.f32 %v1697, %v1698
    %v1700 = vpack.c.bf16 %v1699, %v1699
    %v1701 = vunpack.c.l.bf16 %v1700
    %v1702 = vmax.f32 %v1701, 0.0
    %v1703 = vpack.c.bf16 %v1702, %v1702
    %v1704 = vunpack.c.l.bf16 %v1703
    %v1705 = vld [vmem:[%s7] sm:$0x1]
    %v1707 = vperm.slane %v1705, 0
    %v1709 = vmul.f32 %v1704, %v1707
    %1710 = vadd.xlane.f32.xlu0 %v1709
    %v1711 = vpop.xlane.xlu0 %1710
    %s1712 = sld [smem:[#allocation2]]
    %v1713 = vstv %s1712
    %v1714 = vadd.f32 %v1711, %v1713
    %vm1715 = vcmask 7168
    %1716 = vst.msk [vmem:[%s9] sm:$0xff] %vm1715, %v1714
    // Predicated region
    $region58: #{tpu_custom_call.1} parent=1 // pred_check
      _
    $region59: #{tpu_custom_call.1} parent=1 // pred_check_branch
      %1718 = sbr.rel (0) target = $region61
    $region60: #{tpu_custom_call.1} parent=1 // pred_region
      _
    $region61: #{tpu_custom_call.1} parent=1 // pred_fallthru
      _
    // Predicated region
    $region62: #{tpu_custom_call.1} parent=1 // pred_check
      _
    $region63: #{tpu_custom_call.1} parent=1 // pred_check_branch
      %1720 = sbr.rel (0) target = $region65
    $region64: #{tpu_custom_call.1} parent=1 // pred_region
      _
    $region65: #{tpu_custom_call.1} parent=1 // pred_fallthru
      _
    %1721 = vsyncpa [#allocation4], 1
    %1722 = vsyncpa [#allocation6], 1
    %1723 = vsyncpa [#allocation9], 1

</llo_original>
